<compile_context>
chip_gen: v6e
topology: v6e:2x2x1
jax: 0.10.0
libtpu: 0.0.40
codegen_flags: <defaults>
</compile_context>

<pallas_src>
import functools

import jax
import jax.numpy as jnp
from jax import lax
from jax.experimental import pallas as pl
from jax.experimental.pallas import tpu as pltpu


def _round_up(x, m):
    return ((x + m - 1) // m) * m


def _mmcl_pgd_kernel(ftr_ref, alpha0_ref, out_ref, *, bs, bs_p, tr, gamma, reg,
                     C, eta, num_iters, use_norm, use_bf16_matmul):
    """One row-block of the MMCL_PGD hot path.

    ftr_ref   : (2*bs_p, Dp) f32, view-0 rows then view-1 rows (zero padded).
    alpha0_ref: (tr, bs_p)   f32, this block's rows of the PGD dual init.
    out_ref   : (8, 128)     f32, partial loss sums for this block
                (sublane row p carries scalar p, broadcast across lanes).
    """
    rb = pl.program_id(0)
    row0 = pl.multiple_of(rb * tr, tr)                # global first row of block
    off_v0 = row0
    off_v1 = pl.multiple_of(bs_p + rb * tr, tr)

    # ---------------- masks (exclude diagonal and padding) -----------------
    gi = lax.broadcasted_iota(jnp.int32, (tr, bs_p), 0) + row0
    gj = lax.broadcasted_iota(jnp.int32, (tr, bs_p), 1)
    off_mask = jnp.where((gi != gj) & (gi < bs) & (gj < bs), 1.0, 0.0)
    vr = lax.broadcasted_iota(jnp.int32, (tr, 1), 0) + row0
    valid_r = jnp.where(vr < bs, 1.0, 0.0)            # (tr, 1)

    # ---------------- RBF Gram kernel (loop-invariant MXU RHS) -------------
    # gamma == sigma (0.07): matches compute_kernel(gamma=self.sigma) literally.
    X = ftr_ref[0:bs_p, :]                            # (bs_p, Dp) view-0 rows
    Xb = ftr_ref[pl.ds(off_v0, tr), :]                # (tr, Dp)  block view-0 rows
    xn = jnp.sum(X * X, axis=1, keepdims=True)        # (bs_p, 1)
    xnT = jnp.transpose(xn)                           # (1, bs_p)
    xx = lax.dot_general(X, X, (((1,), (1,)), ((), ())),
                         preferred_element_type=jnp.float32)        # (bs_p,bs_p)
    KK = jnp.exp(-gamma * jnp.maximum(xn + xnT - 2.0 * xx, 0.0))
    KK_mm = KK.astype(jnp.bfloat16) if use_bf16_matmul else KK      # matmul RHS

    xbn = jnp.sum(Xb * Xb, axis=1, keepdims=True)     # (tr, 1)
    xbx = lax.dot_general(Xb, X, (((1,), (1,)), ((), ())),
                          preferred_element_type=jnp.float32)       # (tr, bs_p)
    KKb = jnp.exp(-gamma * jnp.maximum(xbn + xnT - 2.0 * xbx, 0.0)) # block rows of KK
    one_m_KKb = 1.0 - KKb                             # fused (s - KK_d0*s) factor

    # ---------------- Nesterov PGD on this block's rows --------------------
    # grad[i,j] = (y @ KK)[i,j] + reg*y[i,j] + s[i]*(1 - KK_d0[i,j]) - (d[i] + 2)
    # with s[i] = sum_k y[i,k], d[i] = sum_k KK_d0[i,k]*y[i,k]; masked entries
    # of y stay exactly 0 because g is masked and clip(0 - 0) == 0.
    a0 = alpha0_ref[...] * off_mask

    def body(t, carry):
        a, a_prev = carry
        tf = t.astype(jnp.float32)
        beta = tf / (tf + 3.0)
        y = a + beta * (a - a_prev)                               # (tr, bs_p) f32
        s = jnp.sum(y, axis=1, keepdims=True)                     # (tr, 1)
        d2 = jnp.sum(KKb * y, axis=1, keepdims=True) + 2.0        # (tr, 1)
        ym = y.astype(jnp.bfloat16) if use_bf16_matmul else y
        mm = lax.dot_general(ym, KK_mm, (((1,), (0,)), ((), ())),
                             preferred_element_type=jnp.float32)  # y @ KK (MXU)
        g = (mm + reg * y + s * one_m_KKb - d2) * off_mask
        if use_norm:
            g = g * lax.rsqrt(
                jnp.maximum(jnp.sum(g * g, axis=1, keepdims=True), 1e-24))
        a_new = jnp.clip(y - eta * g, 0.0, C)                     # exact 0 / C in f32
        return (a_new, a)

    alpha, _ = lax.fori_loop(0, num_iters, body, (a0, a0))

    # ---------------- loss terms (one-time, after the loop) ----------------
    X2 = ftr_ref[0:bs_p, :]                           # re-read: short live range
    Xb2 = ftr_ref[pl.ds(off_v0, tr), :]
    Xpb = ftr_ref[pl.ds(off_v1, tr), :]               # (tr, Dp) block view-1 rows
    xn2T = jnp.transpose(jnp.sum(X2 * X2, axis=1, keepdims=True))   # (1, bs_p)
    xpn = jnp.sum(Xpb * Xpb, axis=1, keepdims=True)                 # (tr, 1)
    xxp = lax.dot_general(Xpb, X2, (((1,), (1,)), ((), ())),
                          preferred_element_type=jnp.float32)       # (tr, bs_p)
    # Kst[r, j] = Ks[j, row0+r] = rbf(x_j, x'_{row0+r})  (row-oriented Ks^T block)
    Kst = jnp.exp(-gamma * jnp.maximum(xpn + xn2T - 2.0 * xxp, 0.0))
    diff = Xb2 - Xpb                                  # Ks diagonal for this block
    ksd = jnp.exp(-gamma * jnp.sum(diff * diff, axis=1, keepdims=True))  # (tr,1)

    alpha_x = jnp.sum(alpha, axis=1, keepdims=True)   # (tr, 1)
    pos_sum = jnp.sum(alpha_x * ksd * valid_r)
    ksd_sum = jnp.sum(ksd * valid_r)
    neg_sum = jnp.sum(alpha * Kst)                    # alpha already masked
    kn_sum = jnp.sum(Kst * off_mask)                  # off-diag, valid entries
    c_cnt = jnp.sum(jnp.where(alpha == C, 1.0, 0.0) * off_mask)
    pos_cnt = jnp.sum(jnp.where(alpha > 0.0, 1.0, 0.0) * off_mask)
    zero_cnt = jnp.sum(jnp.where(alpha == 0.0, 1.0, 0.0) * off_mask)

    # Lane-dense (8, 128) output slab: sublane row p carries scalar p.
    ridx = lax.broadcasted_iota(jnp.int32, (8, 128), 0)
    out_ref[...] = (jnp.where(ridx == 0, pos_sum, 0.0)
                    + jnp.where(ridx == 1, ksd_sum, 0.0)
                    + jnp.where(ridx == 2, neg_sum, 0.0)
                    + jnp.where(ridx == 3, kn_sum, 0.0)
                    + jnp.where(ridx == 4, c_cnt, 0.0)
                    + jnp.where(ridx == 5, pos_cnt, 0.0)
                    + jnp.where(ridx == 6, zero_cnt, 0.0))


def _pick_tile_rows(bs_p):
    """Row-block size for the PGD grid (rows evolve independently)."""
    if bs_p < 256:
        return max(bs_p // 2, 8)      # keep n_blocks >= 2 even for tiny batches
    kind = ""
    try:
        kind = jax.devices()[0].device_kind.lower()
    except Exception:
        pass
    # v7x: 64 MiB VMEM / 2 TCs -> 128-row tiles keep n_blocks >= 2 per chip.
    # v5e/v6e: 128 MiB VMEM -> 256-row tiles amortize the loop-invariant MXU RHS.
    if bs_p >= 512 and bs_p % 256 == 0 and "v7" not in kind:
        return 256
    return 128


def _vmem_limit_bytes(bs_p, d_p, tr, use_bf16):
    ftr = 2 * bs_p * d_p * 4            # single-buffered (pl.Buffered(1))
    a0 = 2 * tr * bs_p * 4              # double-buffered input
    out = 2 * 8 * 128 * 4
    gram = 2 * bs_p * bs_p * 4          # setup peak (xx + KK) / (f32 KK + bf16 copy)
    temps = 14 * tr * bs_p * 4          # loop-carried state + per-iter temporaries
    est = (ftr + a0 + out + gram + temps) * 1.3
    return int(min(max(est, 32 * 1024 * 1024), 112 * 1024 * 1024))


def mmcl_pgd_forward(z, *, sigma=0.07, reg=0.1, C=1.0, eta=0.001,
                     num_iters=1000, use_norm=True, multiplier=2,
                     init_key=None, use_bf16_matmul=True, tile_rows=None):
    """JAX/Pallas equivalent of MMCL_PGD.forward (kernel='rbf', solver='nesterov')."""
    n, n_views, d = z.shape
    assert n % multiplier == 0
    assert n_views == 2

    # F.normalize(z, p=2, dim=1): normalize across the views axis (dim=1),
    # exactly as the PyTorch code does, then cat(unbind(dim=1), dim=0).
    denom = jnp.maximum(jnp.sqrt(jnp.sum(z * z, axis=1, keepdims=True)), 1e-12)
    zn = (z / denom).astype(jnp.float32)

    bs = n
    nn_ = bs - 1

    # Padding: bs -> multiple of 128 (lane-aligned), D -> multiple of 128.
    bs_p = _round_up(bs, 128)
    d_p = _round_up(d, 128)
    ftr = jnp.zeros((2 * bs_p, d_p), jnp.float32)
    ftr = ftr.at[:bs, :d].set(zn[:, 0, :])
    ftr = ftr.at[bs_p:bs_p + bs, :d].set(zn[:, 1, :])

    tr = tile_rows if tile_rows is not None else _pick_tile_rows(bs_p)
    assert bs_p % tr == 0 and tr % 8 == 0
    n_blocks = bs_p // tr

    # alpha init ~ relu(randn).clamp(0, C); torch uses an unseeded randn so the
    # exact values cannot be reproduced -> deterministic JAX key instead.
    if init_key is None:
        init_key = jax.random.PRNGKey(1)
    a0 = jnp.clip(jax.nn.relu(jax.random.normal(init_key, (bs_p, bs_p),
                                                jnp.float32)), 0.0, C)
    a0 = a0 * (1.0 - jnp.eye(bs_p, dtype=jnp.float32))

    # compute_kernel(..., gamma=self.sigma) uses sigma literally as gamma.
    gamma = float(sigma)

    kern = functools.partial(
        _mmcl_pgd_kernel, bs=bs, bs_p=bs_p, tr=tr, gamma=gamma,
        reg=float(reg), C=float(C), eta=float(eta), num_iters=int(num_iters),
        use_norm=bool(use_norm), use_bf16_matmul=bool(use_bf16_matmul))

    flops = n_blocks * (2 * num_iters * tr * bs_p * bs_p
                        + 2 * bs_p * bs_p * d_p + 4 * tr * d_p * bs_p)
    transc = n_blocks * (bs_p * bs_p + 2 * tr * bs_p + tr) + num_iters * bs_p
    bytes_acc = (2 * bs_p * d_p + bs_p * bs_p + n_blocks * 8 * 128) * 4

    out = pl.pallas_call(
        kern,
        out_shape=jax.ShapeDtypeStruct((n_blocks * 8, 128), jnp.float32),
        grid=(n_blocks,),
        in_specs=[pl.BlockSpec((2 * bs_p, d_p), lambda rb: (0, 0),
                               pipeline_mode=pl.Buffered(1)),   # constant block
                  pl.BlockSpec((tr, bs_p), lambda rb: (rb, 0))],
        out_specs=pl.BlockSpec((8, 128), lambda rb: (rb, 0)),
        compiler_params=pltpu.CompilerParams(
            dimension_semantics=("parallel",),
            vmem_limit_bytes=_vmem_limit_bytes(bs_p, d_p, tr, use_bf16_matmul)),
        cost_estimate=pl.CostEstimate(flops=int(flops),
                                      transcendentals=int(transc),
                                      bytes_accessed=int(bytes_acc)),
    )(ftr, a0)

    # Reduce the per-block partial sums.
    stats = jnp.sum(out[:, 0].reshape(n_blocks, 8), axis=0)
    pos_sum, ksd_sum, neg_sum, kn_sum = stats[0], stats[1], stats[2], stats[3]
    c_cnt, pos_cnt, zero_cnt = stats[4], stats[5], stats[6]

    pos_loss = pos_sum / bs
    neg_loss = neg_sum / bs
    loss = neg_loss - pos_loss
    pos_mean = ksd_sum / bs
    kn_mean = kn_sum / (bs * nn_)
    sparsity = c_cnt / (pos_cnt + 1e-10)
    num_zero = zero_cnt / (bs * nn_)
    return loss, pos_mean, kn_mean, sparsity, num_zero, 0.0


if __name__ == "__main__":
    key = jax.random.PRNGKey(0)
    B, V, D = 16, 2, 32                      # batch, views(=multiplier), feat dim
    z = jax.random.normal(key, (B, V, D), dtype=jnp.float32)

    outs = mmcl_pgd_forward(z, sigma=0.07, reg=0.1, C=1.0, eta=0.001,
                            num_iters=200, use_norm=True)
    jax.block_until_ready(outs[:5])
    print("KERNEL_OK")
</pallas_src>

<mosaic_0001>
module attributes {stable_mosaic.version = 11 : i64} {
  func.func @_mmcl_pgd_kernel(%arg0: i32, %arg1: memref<256x128xf32, #tpu.memory_space<vmem>>, %arg2: memref<64x128xf32, #tpu.memory_space<vmem>>, %arg3: memref<8x128xf32, #tpu.memory_space<vmem>>) attributes {dimension_semantics = [#tpu.dimension_semantics<parallel>], iteration_bounds = array<i64: 2>, scalar_prefetch = 0 : i64, scratch_operands = 0 : i64, tpu.core_type = #tpu.core_type<tc>, window_params = [{pipeline_mode = #tpu.pipeline_mode<synchronous>, transform_indices = @transform_0, window_bounds = array<i64: 256, 128>}, {transform_indices = @transform_1, window_bounds = array<i64: 64, 128>}, {transform_indices = @transform_2, window_bounds = array<i64: 8, 128>}]} {
    %c64_i32 = arith.constant 64 : i32
    %0 = arith.muli %arg0, %c64_i32 : i32
    %1 = tpu.assume_multiple %0, 64 : i32
    %c64_i32_0 = arith.constant 64 : i32
    %2 = arith.muli %arg0, %c64_i32_0 : i32
    %c128_i32 = arith.constant 128 : i32
    %3 = arith.addi %c128_i32, %2 : i32
    %4 = tpu.assume_multiple %3, 64 : i32
    %5 = tpu.iota {dimensions = array<i32: 0>} : vector<64x128xi32>
    %6 = vector.broadcast %1 : i32 to vector<64x128xi32>
    %7 = arith.addi %5, %6 : vector<64x128xi32>
    %8 = tpu.iota {dimensions = array<i32: 1>} : vector<64x128xi32>
    %9 = arith.cmpi ne, %7, %8 : vector<64x128xi32>
    %c16_i32 = arith.constant 16 : i32
    %10 = vector.broadcast %c16_i32 : i32 to vector<64x128xi32>
    %11 = arith.cmpi slt, %7, %10 : vector<64x128xi32>
    %12 = arith.andi %9, %11 : vector<64x128xi1>
    %c16_i32_1 = arith.constant 16 : i32
    %13 = vector.broadcast %c16_i32_1 : i32 to vector<64x128xi32>
    %14 = arith.cmpi slt, %8, %13 : vector<64x128xi32>
    %15 = arith.andi %12, %14 : vector<64x128xi1>
    %cst = arith.constant 1.000000e+00 : f32
    %cst_2 = arith.constant 0.000000e+00 : f32
    %16 = vector.broadcast %cst : f32 to vector<64x128xf32>
    %17 = vector.broadcast %cst_2 : f32 to vector<64x128xf32>
    %18 = arith.select %15, %16, %17 : vector<64x128xi1>, vector<64x128xf32>
    %19 = tpu.iota {dimensions = array<i32: 0>} : vector<64x1xi32>
    %20 = vector.broadcast %1 : i32 to vector<64x1xi32>
    %21 = arith.addi %19, %20 : vector<64x1xi32>
    %c16_i32_3 = arith.constant 16 : i32
    %22 = vector.broadcast %c16_i32_3 : i32 to vector<64x1xi32>
    %23 = arith.cmpi slt, %21, %22 : vector<64x1xi32>
    %cst_4 = arith.constant 1.000000e+00 : f32
    %cst_5 = arith.constant 0.000000e+00 : f32
    %24 = vector.broadcast %cst_4 : f32 to vector<64x1xf32>
    %25 = vector.broadcast %cst_5 : f32 to vector<64x1xf32>
    %26 = arith.select %23, %24, %25 : vector<64x1xi1>, vector<64x1xf32>
    %c0 = arith.constant 0 : index
    %c0_6 = arith.constant 0 : index
    %27 = vector.load %arg1[%c0, %c0_6] : memref<256x128xf32, #tpu.memory_space<vmem>>, vector<128x128xf32>
    %28 = arith.index_cast %1 : i32 to index
    %c0_7 = arith.constant 0 : index
    %29 = vector.load %arg1[%28, %c0_7] : memref<256x128xf32, #tpu.memory_space<vmem>>, vector<64x128xf32>
    %30 = arith.mulf %27, %27 : vector<128x128xf32>
    %cst_8 = arith.constant dense<0.000000e+00> : vector<128xf32>
    %31 = vector.multi_reduction <add>, %30, %cst_8 [1] : vector<128x128xf32> to vector<128xf32>
    %32 = vector.shape_cast %31 : vector<128xf32> to vector<128x1xf32>
    %33 = tpu.transpose %32, [1, 0] : vector<128x1xf32> -> vector<1x128xf32>
    %cst_9 = arith.constant dense<0.000000e+00> : vector<128x128xf32>
    %34 = tpu.matmul %27, %27, %cst_9 {dimension_numbers = #tpu.dot_dimension_numbers<[1], [1], [0], [0], [0, 0, 1, 0], [], []>} : vector<128x128xf32>, vector<128x128xf32>, vector<128x128xf32> -> vector<128x128xf32>
    %35 = vector.broadcast %32 : vector<128x1xf32> to vector<128x128xf32>
    %36 = vector.broadcast %33 : vector<1x128xf32> to vector<128x128xf32>
    %37 = arith.addf %35, %36 : vector<128x128xf32>
    %cst_10 = arith.constant 2.000000e+00 : f32
    %38 = vector.broadcast %cst_10 : f32 to vector<128x128xf32>
    %39 = arith.mulf %38, %34 : vector<128x128xf32>
    %40 = arith.subf %37, %39 : vector<128x128xf32>
    %cst_11 = arith.constant 0.000000e+00 : f32
    %41 = vector.broadcast %cst_11 : f32 to vector<128x128xf32>
    %42 = arith.maximumf %40, %41 : vector<128x128xf32>
    %cst_12 = arith.constant -7.000000e-02 : f32
    %43 = vector.broadcast %cst_12 : f32 to vector<128x128xf32>
    %44 = arith.mulf %43, %42 : vector<128x128xf32>
    %45 = math.exp %44 : vector<128x128xf32>
    %46 = arith.truncf %45 : vector<128x128xf32> to vector<128x128xbf16>
    %47 = arith.mulf %29, %29 : vector<64x128xf32>
    %cst_13 = arith.constant dense<0.000000e+00> : vector<64xf32>
    %48 = vector.multi_reduction <add>, %47, %cst_13 [1] : vector<64x128xf32> to vector<64xf32>
    %49 = vector.shape_cast %48 : vector<64xf32> to vector<64x1xf32>
    %cst_14 = arith.constant dense<0.000000e+00> : vector<64x128xf32>
    %50 = tpu.matmul %29, %27, %cst_14 {dimension_numbers = #tpu.dot_dimension_numbers<[1], [1], [0], [0], [0, 0, 1, 0], [], []>} : vector<64x128xf32>, vector<128x128xf32>, vector<64x128xf32> -> vector<64x128xf32>
    %51 = vector.broadcast %49 : vector<64x1xf32> to vector<64x128xf32>
    %52 = vector.broadcast %33 : vector<1x128xf32> to vector<64x128xf32>
    %53 = arith.addf %51, %52 : vector<64x128xf32>
    %cst_15 = arith.constant 2.000000e+00 : f32
    %54 = vector.broadcast %cst_15 : f32 to vector<64x128xf32>
    %55 = arith.mulf %54, %50 : vector<64x128xf32>
    %56 = arith.subf %53, %55 : vector<64x128xf32>
    %cst_16 = arith.constant 0.000000e+00 : f32
    %57 = vector.broadcast %cst_16 : f32 to vector<64x128xf32>
    %58 = arith.maximumf %56, %57 : vector<64x128xf32>
    %cst_17 = arith.constant -7.000000e-02 : f32
    %59 = vector.broadcast %cst_17 : f32 to vector<64x128xf32>
    %60 = arith.mulf %59, %58 : vector<64x128xf32>
    %61 = math.exp %60 : vector<64x128xf32>
    %cst_18 = arith.constant 1.000000e+00 : f32
    %62 = vector.broadcast %cst_18 : f32 to vector<64x128xf32>
    %63 = arith.subf %62, %61 : vector<64x128xf32>
    %c0_19 = arith.constant 0 : index
    %c0_20 = arith.constant 0 : index
    %64 = vector.load %arg2[%c0_19, %c0_20] : memref<64x128xf32, #tpu.memory_space<vmem>>, vector<64x128xf32>
    %65 = arith.mulf %64, %18 : vector<64x128xf32>
    %c0_i32 = arith.constant 0 : i32
    %c200_i32 = arith.constant 200 : i32
    %66 = arith.addi %c0_i32, %c200_i32 : i32
    %c1_i32 = arith.constant 1 : i32
    %67:2 = scf.for %arg4 = %c0_i32 to %66 step %c1_i32 iter_args(%arg5 = %65, %arg6 = %65) -> (vector<64x128xf32>, vector<64x128xf32>)  : i32 {
      %195 = arith.sitofp %arg4 : i32 to f32
      %cst_62 = arith.constant 3.000000e+00 : f32
      %196 = arith.addf %195, %cst_62 : f32
      %197 = arith.divf %195, %196 : f32
      %198 = arith.subf %arg5, %arg6 : vector<64x128xf32>
      %199 = vector.broadcast %197 : f32 to vector<64x128xf32>
      %200 = arith.mulf %199, %198 : vector<64x128xf32>
      %201 = arith.addf %arg5, %200 : vector<64x128xf32>
      %cst_63 = arith.constant dense<0.000000e+00> : vector<64xf32>
      %202 = vector.multi_reduction <add>, %201, %cst_63 [1] : vector<64x128xf32> to vector<64xf32>
      %203 = vector.shape_cast %202 : vector<64xf32> to vector<64x1xf32>
      %204 = arith.mulf %61, %201 : vector<64x128xf32>
      %cst_64 = arith.constant dense<0.000000e+00> : vector<64xf32>
      %205 = vector.multi_reduction <add>, %204, %cst_64 [1] : vector<64x128xf32> to vector<64xf32>
      %206 = vector.shape_cast %205 : vector<64xf32> to vector<64x1xf32>
      %cst_65 = arith.constant 2.000000e+00 : f32
      %207 = vector.broadcast %cst_65 : f32 to vector<64x1xf32>
      %208 = arith.addf %206, %207 : vector<64x1xf32>
      %209 = arith.truncf %201 : vector<64x128xf32> to vector<64x128xbf16>
      %cst_66 = arith.constant dense<0.000000e+00> : vector<64x128xf32>
      %210 = tpu.matmul %209, %46, %cst_66 {dimension_numbers = #tpu.dot_dimension_numbers<[1], [0], [0], [1], [0, 0, 1, 1], [], []>} : vector<64x128xbf16>, vector<128x128xbf16>, vector<64x128xf32> -> vector<64x128xf32>
      %cst_67 = arith.constant 1.000000e-01 : f32
      %211 = vector.broadcast %cst_67 : f32 to vector<64x128xf32>
      %212 = arith.mulf %211, %201 : vector<64x128xf32>
      %213 = arith.addf %210, %212 : vector<64x128xf32>
      %214 = vector.broadcast %203 : vector<64x1xf32> to vector<64x128xf32>
      %215 = arith.mulf %214, %63 : vector<64x128xf32>
      %216 = arith.addf %213, %215 : vector<64x128xf32>
      %217 = vector.broadcast %208 : vector<64x1xf32> to vector<64x128xf32>
      %218 = arith.subf %216, %217 : vector<64x128xf32>
      %219 = arith.mulf %218, %18 : vector<64x128xf32>
      %220 = arith.mulf %219, %219 : vector<64x128xf32>
      %cst_68 = arith.constant dense<0.000000e+00> : vector<64xf32>
      %221 = vector.multi_reduction <add>, %220, %cst_68 [1] : vector<64x128xf32> to vector<64xf32>
      %222 = vector.shape_cast %221 : vector<64xf32> to vector<64x1xf32>
      %cst_69 = arith.constant 1.000000e-24 : f32
      %223 = vector.broadcast %cst_69 : f32 to vector<64x1xf32>
      %224 = arith.maximumf %222, %223 : vector<64x1xf32>
      %225 = math.rsqrt %224 : vector<64x1xf32>
      %226 = vector.broadcast %225 : vector<64x1xf32> to vector<64x128xf32>
      %227 = arith.mulf %219, %226 : vector<64x128xf32>
      %cst_70 = arith.constant 1.000000e-03 : f32
      %228 = vector.broadcast %cst_70 : f32 to vector<64x128xf32>
      %229 = arith.mulf %228, %227 : vector<64x128xf32>
      %230 = arith.subf %201, %229 : vector<64x128xf32>
      %cst_71 = arith.constant 0.000000e+00 : f32
      %cst_72 = arith.constant 1.000000e+00 : f32
      %231 = vector.broadcast %cst_71 : f32 to vector<64x128xf32>
      %232 = arith.maximumf %231, %230 : vector<64x128xf32>
      %233 = vector.broadcast %cst_72 : f32 to vector<64x128xf32>
      %234 = arith.minimumf %233, %232 : vector<64x128xf32>
      scf.yield %234, %arg5 : vector<64x128xf32>, vector<64x128xf32>
    }
    %c200_i32_21 = arith.constant 200 : i32
    %c0_22 = arith.constant 0 : index
    %c0_23 = arith.constant 0 : index
    %68 = vector.load %arg1[%c0_22, %c0_23] : memref<256x128xf32, #tpu.memory_space<vmem>>, vector<128x128xf32>
    %69 = arith.index_cast %1 : i32 to index
    %c0_24 = arith.constant 0 : index
    %70 = vector.load %arg1[%69, %c0_24] : memref<256x128xf32, #tpu.memory_space<vmem>>, vector<64x128xf32>
    %71 = arith.index_cast %4 : i32 to index
    %c0_25 = arith.constant 0 : index
    %72 = vector.load %arg1[%71, %c0_25] : memref<256x128xf32, #tpu.memory_space<vmem>>, vector<64x128xf32>
    %73 = arith.mulf %68, %68 : vector<128x128xf32>
    %cst_26 = arith.constant dense<0.000000e+00> : vector<128xf32>
    %74 = vector.multi_reduction <add>, %73, %cst_26 [1] : vector<128x128xf32> to vector<128xf32>
    %75 = vector.shape_cast %74 : vector<128xf32> to vector<128x1xf32>
    %76 = tpu.transpose %75, [1, 0] : vector<128x1xf32> -> vector<1x128xf32>
    %77 = arith.mulf %72, %72 : vector<64x128xf32>
    %cst_27 = arith.constant dense<0.000000e+00> : vector<64xf32>
    %78 = vector.multi_reduction <add>, %77, %cst_27 [1] : vector<64x128xf32> to vector<64xf32>
    %79 = vector.shape_cast %78 : vector<64xf32> to vector<64x1xf32>
    %cst_28 = arith.constant dense<0.000000e+00> : vector<64x128xf32>
    %80 = tpu.matmul %72, %68, %cst_28 {dimension_numbers = #tpu.dot_dimension_numbers<[1], [1], [0], [0], [0, 0, 1, 0], [], []>} : vector<64x128xf32>, vector<128x128xf32>, vector<64x128xf32> -> vector<64x128xf32>
    %81 = vector.broadcast %79 : vector<64x1xf32> to vector<64x128xf32>
    %82 = vector.broadcast %76 : vector<1x128xf32> to vector<64x128xf32>
    %83 = arith.addf %81, %82 : vector<64x128xf32>
    %cst_29 = arith.constant 2.000000e+00 : f32
    %84 = vector.broadcast %cst_29 : f32 to vector<64x128xf32>
    %85 = arith.mulf %84, %80 : vector<64x128xf32>
    %86 = arith.subf %83, %85 : vector<64x128xf32>
    %cst_30 = arith.constant 0.000000e+00 : f32
    %87 = vector.broadcast %cst_30 : f32 to vector<64x128xf32>
    %88 = arith.maximumf %86, %87 : vector<64x128xf32>
    %cst_31 = arith.constant -7.000000e-02 : f32
    %89 = vector.broadcast %cst_31 : f32 to vector<64x128xf32>
    %90 = arith.mulf %89, %88 : vector<64x128xf32>
    %91 = math.exp %90 : vector<64x128xf32>
    %92 = arith.subf %70, %72 : vector<64x128xf32>
    %93 = arith.mulf %92, %92 : vector<64x128xf32>
    %cst_32 = arith.constant dense<0.000000e+00> : vector<64xf32>
    %94 = vector.multi_reduction <add>, %93, %cst_32 [1] : vector<64x128xf32> to vector<64xf32>
    %95 = vector.shape_cast %94 : vector<64xf32> to vector<64x1xf32>
    %cst_33 = arith.constant -7.000000e-02 : f32
    %96 = vector.broadcast %cst_33 : f32 to vector<64x1xf32>
    %97 = arith.mulf %96, %95 : vector<64x1xf32>
    %98 = math.exp %97 : vector<64x1xf32>
    %cst_34 = arith.constant dense<0.000000e+00> : vector<64xf32>
    %99 = vector.multi_reduction <add>, %67#0, %cst_34 [1] : vector<64x128xf32> to vector<64xf32>
    %100 = vector.shape_cast %99 : vector<64xf32> to vector<64x1xf32>
    %101 = arith.mulf %100, %98 : vector<64x1xf32>
    %102 = arith.mulf %101, %26 : vector<64x1xf32>
    %103 = vector.shape_cast %102 : vector<64x1xf32> to vector<1x64x1xf32>
    %cst_35 = arith.constant dense<0.000000e+00> : vector<1xf32>
    %104 = vector.multi_reduction <add>, %103, %cst_35 [1, 2] : vector<1x64x1xf32> to vector<1xf32>
    %105 = vector.shape_cast %104 : vector<1xf32> to vector<1x1x1xf32>
    %106 = vector.extract %105[0, 0, 0] : f32 from vector<1x1x1xf32>
    %107 = arith.mulf %98, %26 : vector<64x1xf32>
    %108 = vector.shape_cast %107 : vector<64x1xf32> to vector<1x64x1xf32>
    %cst_36 = arith.constant dense<0.000000e+00> : vector<1xf32>
    %109 = vector.multi_reduction <add>, %108, %cst_36 [1, 2] : vector<1x64x1xf32> to vector<1xf32>
    %110 = vector.shape_cast %109 : vector<1xf32> to vector<1x1x1xf32>
    %111 = vector.extract %110[0, 0, 0] : f32 from vector<1x1x1xf32>
    %112 = arith.mulf %67#0, %91 : vector<64x128xf32>
    %113 = vector.shape_cast %112 : vector<64x128xf32> to vector<1x64x128xf32>
    %cst_37 = arith.constant dense<0.000000e+00> : vector<1xf32>
    %114 = vector.multi_reduction <add>, %113, %cst_37 [1, 2] : vector<1x64x128xf32> to vector<1xf32>
    %115 = vector.shape_cast %114 : vector<1xf32> to vector<1x1x1xf32>
    %116 = vector.extract %115[0, 0, 0] : f32 from vector<1x1x1xf32>
    %117 = arith.mulf %91, %18 : vector<64x128xf32>
    %118 = vector.shape_cast %117 : vector<64x128xf32> to vector<1x64x128xf32>
    %cst_38 = arith.constant dense<0.000000e+00> : vector<1xf32>
    %119 = vector.multi_reduction <add>, %118, %cst_38 [1, 2] : vector<1x64x128xf32> to vector<1xf32>
    %120 = vector.shape_cast %119 : vector<1xf32> to vector<1x1x1xf32>
    %121 = vector.extract %120[0, 0, 0] : f32 from vector<1x1x1xf32>
    %cst_39 = arith.constant 1.000000e+00 : f32
    %122 = vector.broadcast %cst_39 : f32 to vector<64x128xf32>
    %123 = arith.cmpf oeq, %67#0, %122 : vector<64x128xf32>
    %cst_40 = arith.constant 1.000000e+00 : f32
    %cst_41 = arith.constant 0.000000e+00 : f32
    %124 = vector.broadcast %cst_40 : f32 to vector<64x128xf32>
    %125 = vector.broadcast %cst_41 : f32 to vector<64x128xf32>
    %126 = arith.select %123, %124, %125 : vector<64x128xi1>, vector<64x128xf32>
    %127 = arith.mulf %126, %18 : vector<64x128xf32>
    %128 = vector.shape_cast %127 : vector<64x128xf32> to vector<1x64x128xf32>
    %cst_42 = arith.constant dense<0.000000e+00> : vector<1xf32>
    %129 = vector.multi_reduction <add>, %128, %cst_42 [1, 2] : vector<1x64x128xf32> to vector<1xf32>
    %130 = vector.shape_cast %129 : vector<1xf32> to vector<1x1x1xf32>
    %131 = vector.extract %130[0, 0, 0] : f32 from vector<1x1x1xf32>
    %cst_43 = arith.constant 0.000000e+00 : f32
    %132 = vector.broadcast %cst_43 : f32 to vector<64x128xf32>
    %133 = arith.cmpf ogt, %67#0, %132 : vector<64x128xf32>
    %cst_44 = arith.constant 1.000000e+00 : f32
    %cst_45 = arith.constant 0.000000e+00 : f32
    %134 = vector.broadcast %cst_44 : f32 to vector<64x128xf32>
    %135 = vector.broadcast %cst_45 : f32 to vector<64x128xf32>
    %136 = arith.select %133, %134, %135 : vector<64x128xi1>, vector<64x128xf32>
    %137 = arith.mulf %136, %18 : vector<64x128xf32>
    %138 = vector.shape_cast %137 : vector<64x128xf32> to vector<1x64x128xf32>
    %cst_46 = arith.constant dense<0.000000e+00> : vector<1xf32>
    %139 = vector.multi_reduction <add>, %138, %cst_46 [1, 2] : vector<1x64x128xf32> to vector<1xf32>
    %140 = vector.shape_cast %139 : vector<1xf32> to vector<1x1x1xf32>
    %141 = vector.extract %140[0, 0, 0] : f32 from vector<1x1x1xf32>
    %cst_47 = arith.constant 0.000000e+00 : f32
    %142 = vector.broadcast %cst_47 : f32 to vector<64x128xf32>
    %143 = arith.cmpf oeq, %67#0, %142 : vector<64x128xf32>
    %cst_48 = arith.constant 1.000000e+00 : f32
    %cst_49 = arith.constant 0.000000e+00 : f32
    %144 = vector.broadcast %cst_48 : f32 to vector<64x128xf32>
    %145 = vector.broadcast %cst_49 : f32 to vector<64x128xf32>
    %146 = arith.select %143, %144, %145 : vector<64x128xi1>, vector<64x128xf32>
    %147 = arith.mulf %146, %18 : vector<64x128xf32>
    %148 = vector.shape_cast %147 : vector<64x128xf32> to vector<1x64x128xf32>
    %cst_50 = arith.constant dense<0.000000e+00> : vector<1xf32>
    %149 = vector.multi_reduction <add>, %148, %cst_50 [1, 2] : vector<1x64x128xf32> to vector<1xf32>
    %150 = vector.shape_cast %149 : vector<1xf32> to vector<1x1x1xf32>
    %151 = vector.extract %150[0, 0, 0] : f32 from vector<1x1x1xf32>
    %152 = tpu.iota {dimensions = array<i32: 0>} : vector<8x128xi32>
    %c0_i32_51 = arith.constant 0 : i32
    %153 = vector.broadcast %c0_i32_51 : i32 to vector<8x128xi32>
    %154 = arith.cmpi eq, %152, %153 : vector<8x128xi32>
    %cst_52 = arith.constant 0.000000e+00 : f32
    %155 = vector.broadcast %106 : f32 to vector<8x128xf32>
    %156 = vector.broadcast %cst_52 : f32 to vector<8x128xf32>
    %157 = arith.select %154, %155, %156 : vector<8x128xi1>, vector<8x128xf32>
    %c1_i32_53 = arith.constant 1 : i32
    %158 = vector.broadcast %c1_i32_53 : i32 to vector<8x128xi32>
    %159 = arith.cmpi eq, %152, %158 : vector<8x128xi32>
    %cst_54 = arith.constant 0.000000e+00 : f32
    %160 = vector.broadcast %111 : f32 to vector<8x128xf32>
    %161 = vector.broadcast %cst_54 : f32 to vector<8x128xf32>
    %162 = arith.select %159, %160, %161 : vector<8x128xi1>, vector<8x128xf32>
    %163 = arith.addf %157, %162 : vector<8x128xf32>
    %c2_i32 = arith.constant 2 : i32
    %164 = vector.broadcast %c2_i32 : i32 to vector<8x128xi32>
    %165 = arith.cmpi eq, %152, %164 : vector<8x128xi32>
    %cst_55 = arith.constant 0.000000e+00 : f32
    %166 = vector.broadcast %116 : f32 to vector<8x128xf32>
    %167 = vector.broadcast %cst_55 : f32 to vector<8x128xf32>
    %168 = arith.select %165, %166, %167 : vector<8x128xi1>, vector<8x128xf32>
    %169 = arith.addf %163, %168 : vector<8x128xf32>
    %c3_i32 = arith.constant 3 : i32
    %170 = vector.broadcast %c3_i32 : i32 to vector<8x128xi32>
    %171 = arith.cmpi eq, %152, %170 : vector<8x128xi32>
    %cst_56 = arith.constant 0.000000e+00 : f32
    %172 = vector.broadcast %121 : f32 to vector<8x128xf32>
    %173 = vector.broadcast %cst_56 : f32 to vector<8x128xf32>
    %174 = arith.select %171, %172, %173 : vector<8x128xi1>, vector<8x128xf32>
    %175 = arith.addf %169, %174 : vector<8x128xf32>
    %c4_i32 = arith.constant 4 : i32
    %176 = vector.broadcast %c4_i32 : i32 to vector<8x128xi32>
    %177 = arith.cmpi eq, %152, %176 : vector<8x128xi32>
    %cst_57 = arith.constant 0.000000e+00 : f32
    %178 = vector.broadcast %131 : f32 to vector<8x128xf32>
    %179 = vector.broadcast %cst_57 : f32 to vector<8x128xf32>
    %180 = arith.select %177, %178, %179 : vector<8x128xi1>, vector<8x128xf32>
    %181 = arith.addf %175, %180 : vector<8x128xf32>
    %c5_i32 = arith.constant 5 : i32
    %182 = vector.broadcast %c5_i32 : i32 to vector<8x128xi32>
    %183 = arith.cmpi eq, %152, %182 : vector<8x128xi32>
    %cst_58 = arith.constant 0.000000e+00 : f32
    %184 = vector.broadcast %141 : f32 to vector<8x128xf32>
    %185 = vector.broadcast %cst_58 : f32 to vector<8x128xf32>
    %186 = arith.select %183, %184, %185 : vector<8x128xi1>, vector<8x128xf32>
    %187 = arith.addf %181, %186 : vector<8x128xf32>
    %c6_i32 = arith.constant 6 : i32
    %188 = vector.broadcast %c6_i32 : i32 to vector<8x128xi32>
    %189 = arith.cmpi eq, %152, %188 : vector<8x128xi32>
    %cst_59 = arith.constant 0.000000e+00 : f32
    %190 = vector.broadcast %151 : f32 to vector<8x128xf32>
    %191 = vector.broadcast %cst_59 : f32 to vector<8x128xf32>
    %192 = arith.select %189, %190, %191 : vector<8x128xi1>, vector<8x128xf32>
    %193 = arith.addf %187, %192 : vector<8x128xf32>
    %c0_60 = arith.constant 0 : index
    %c0_61 = arith.constant 0 : index
    %194 = vector.load %arg3[%c0_60, %c0_61] : memref<8x128xf32, #tpu.memory_space<vmem>>, vector<8x128xf32>
    tpu.vector_store %arg3[%c0_60, %c0_61], %193 {strides = array<i32>} : memref<8x128xf32, #tpu.memory_space<vmem>>, vector<8x128xf32>,
    return
  }
  func.func @transform_0(%arg0: i32) -> (i32, i32) {
    %c0_i32 = arith.constant 0 : i32
    %c0_i32_0 = arith.constant 0 : i32
    %c0_i32_1 = arith.constant 0 : i32
    return %c0_i32, %c0_i32_0 : i32, i32
  }
  func.func @transform_1(%arg0: i32) -> (i32, i32) {
    %c0_i32 = arith.constant 0 : i32
    %c0_i32_0 = arith.constant 0 : i32
    return %arg0, %c0_i32 : i32, i32
  }
  func.func @transform_2(%arg0: i32) -> (i32, i32) {
    %c0_i32 = arith.constant 0 : i32
    %c0_i32_0 = arith.constant 0 : i32
    return %arg0, %c0_i32 : i32, i32
  }
}

</mosaic_0001>

<llo_original>
// kernel: tpu_custom_call.1
$region0: #{tpu_custom_call.1}
  #allocation0 [shape = 'u32[]', space=smem, size = 0x4, offset = 0x4, fixed_abs, tag = 'smem constant byte address 0x4 - core index']
  #allocation1 [shape = 'u32[144,128]{1,0:T(1,128)}', space=vmem, size = 0x12000, scoped, tag = 'internal scratch']
  %s0 = inlined_call_operand.hbm [shape: f32[256,128], index: 0, kind: input, shape index: {}]
  %s1 = inlined_call_operand.hbm [shape: f32[128,128], index: 1, kind: input, shape index: {}]
  %s2 = inlined_call_operand.hbm [shape: f32[16,128], index: 2, kind: output, shape index: {}]
  %s3 = sld [smem:[#allocation0]]
  $region56: #{tpu_custom_call.1} parent=0
    _
  %s5 = ssub.s32 1, %s3
  %s6 = scalar_select 0, %s5, %s3
  $region1: #{tpu_custom_call.1} parent=0
    #allocation2 [shape = 'u8[131072]{0}', space=vmem, size = 0x20000, scoped, tag = 'input window, operand 0, single buffered']
    #allocation3 [shape = 's32[2]{0}', space=sflag, size = 0x8, scoped, tag = 'scoped memory for tpu_custom_call.1']
    #allocation4 [shape = 's32[2]{0}', space=sflag, size = 0x8, scoped, tag = 'scoped memory for tpu_custom_call.1']
    #allocation5 [shape = 'u8[65536]{0}', space=vmem, size = 0x10000, scoped, tag = 'input window, operand 1']
    #allocation6 [shape = 's32[2]{0}', space=sflag, size = 0x8, scoped, tag = 'scoped memory for tpu_custom_call.1']
    #allocation7 [shape = 'u8[8192]{0}', space=vmem, size = 0x2000, scoped, tag = 'output window, operand 0']
    %7 = vsyncpa [#allocation3], 0
    %8 = vsyncpa [#allocation6], 0
    %s9 = scalar_lea.sflag [#allocation6], 1
    %10 = vsyncpa %s9, 0
    %11 = vsyncpa [#allocation4], 0
    %s12 = scalar_lea.sflag [#allocation4], 1
    %13 = vsyncpa %s12, 0
    loop: start=0, step=1, limit=4
    $region2: #{tpu_custom_call.1} parent=1 // loop_pre_header
      _
    $region3: #{tpu_custom_call.1} parent=1 // loop_header
      %s15 = sphi 0, %s19
      %p16 = scmp.ge.s32.totalorder %s15, 4
      %s23 = sphi 0, %s23
      %s25 = sphi 0, %s23
      %s26 = sphi 0, %s25
      %s40 = sphi 0, %s26
      %s46 = sphi 0, %s48
      %s49 = sphi 0, %s46
      %s50 = sphi 0, %s49
      %s66 = sphi 0, %s50
      %s72 = sphi 0, %s74
      %s75 = sphi 0, %s72
      %s76 = sphi 0, %s75
      %s92 = sphi 0, %s76
    $region4: #{tpu_custom_call.1} parent=1 // loop_header_branch
      %18 = sbr.rel (%p16) target = $region8
    $region5: #{tpu_custom_call.1} parent=1 // loop_body
      %s20 = ssub.s32 %s15, 1
      %s21 = ssub.s32 %s15, 2
      %s22 = sadd.s32 %s15, 1
      %s24 = sadd.s32 %s23, 1
      %p27 = scmp.eq.s32.totalorder %s15, 1
      %p28 = scmp.ne.s32.totalorder %s23, %s25
      %p29 = scmp.eq.s32.totalorder %s15, 0
      %p30 = por %p28, %p29
      %p31 = scmp.ne.s32.totalorder %s23, %s25
      %p32 = scmp.eq.s32.totalorder %s20, 1
      %p33 = por %p31, %p32
      %p34 = scmp.ne.s32.totalorder %s25, %s26
      %p35 = scmp.eq.s32.totalorder %s20, 0
      %p36 = por %p34, %p35
      %p37 = scmp.ne.s32.totalorder %s25, %s26
      %p38 = scmp.eq.s32.totalorder %s21, 1
      %p39 = por %p37, %p38
      %p41 = scmp.ne.s32.totalorder %s26, %s40
      %p42 = scmp.eq.s32.totalorder %s21, 0
      %p43 = por %p41, %p42
      %s44 = ssub.s32 %s15, %s22
      %p45 = scmp.eq.s32.totalorder %s44, 0
      %s47 = sadd.s32 %s46, 1
      %s48 = scalar_select %p45, %s46, %s47
      %p51 = pneg %p45
      %p52 = scmp.eq.s32.totalorder %s15, 1
      %p53 = por %p51, %p52
      %p54 = scmp.ne.s32.totalorder %s46, %s49
      %p55 = scmp.eq.s32.totalorder %s15, 0
      %p56 = por %p54, %p55
      %p57 = scmp.ne.s32.totalorder %s46, %s49
      %p58 = scmp.eq.s32.totalorder %s20, 1
      %p59 = por %p57, %p58
      %p60 = scmp.ne.s32.totalorder %s49, %s50
      %p61 = scmp.eq.s32.totalorder %s20, 0
      %p62 = por %p60, %p61
      %p63 = scmp.ne.s32.totalorder %s49, %s50
      %p64 = scmp.eq.s32.totalorder %s21, 1
      %p65 = por %p63, %p64
      %p67 = scmp.ne.s32.totalorder %s50, %s66
      %p68 = scmp.eq.s32.totalorder %s21, 0
      %p69 = por %p67, %p68
      %s70 = ssub.s32 %s15, %s22
      %p71 = scmp.eq.s32.totalorder %s70, 0
      %s73 = sadd.s32 %s72, 1
      %s74 = scalar_select %p71, %s72, %s73
      %p77 = pneg %p71
      %p78 = scmp.eq.s32.totalorder %s15, 1
      %p79 = por %p77, %p78
      %p80 = scmp.ne.s32.totalorder %s72, %s75
      %p81 = scmp.eq.s32.totalorder %s15, 0
      %p82 = por %p80, %p81
      %p83 = scmp.ne.s32.totalorder %s72, %s75
      %p84 = scmp.eq.s32.totalorder %s20, 1
      %p85 = por %p83, %p84
      %p86 = scmp.ne.s32.totalorder %s75, %s76
      %p87 = scmp.eq.s32.totalorder %s20, 0
      %p88 = por %p86, %p87
      %p89 = scmp.ne.s32.totalorder %s75, %s76
      %p90 = scmp.eq.s32.totalorder %s21, 1
      %p91 = por %p89, %p90
      %p93 = scmp.ne.s32.totalorder %s76, %s92
      %p94 = scmp.eq.s32.totalorder %s21, 0
      %p95 = por %p93, %p94
      %p96 = scmp.le.s32.totalorder 1, %s15
      %p97 = scmp.lt.s32.totalorder %s15, 3
      %p98 = pnand %p96, %p97
      %p99 = pneg %p98
      // Predicated region
      $region9: #{tpu_custom_call.1} parent=5 // pred_check
        _
      $region10: #{tpu_custom_call.1} parent=5 // pred_check_branch
        %101 = sbr.rel (%p98) target = $region12
      $region11: #{tpu_custom_call.1} parent=5 // pred_region
        %s102 = ssub.s32 %s15, 1
        // Predicated region
        $region13: #{tpu_custom_call.1} parent=11 // pred_check
          %p103 = pneg %p36
        $region14: #{tpu_custom_call.1} parent=11 // pred_check_branch
          %105 = sbr.rel (%p103) target = $region16
        $region15: #{tpu_custom_call.1} parent=11 // pred_region
          %s107 = ssub.s32 4096, 4096
          %108 = vsyncadd [#allocation3], %s107
          %s109 = sshll.u32 [#allocation2], 4
          %s110 = int_to_ptr.vmem [resolvable:$true] %s109
          %115 = dma.hbm_to_vmem [thread:$0]  %s0, 4096, %s110, [#allocation3], 128, 128, 8
        $region16: #{tpu_custom_call.1} parent=11 // pred_fallthru
          _
      $region12: #{tpu_custom_call.1} parent=5 // pred_fallthru
        _
      %p116 = scmp.lt.s32.totalorder %s15, 2
      // Predicated region
      $region17: #{tpu_custom_call.1} parent=5 // pred_check
        %p117 = pneg %p116
      $region18: #{tpu_custom_call.1} parent=5 // pred_check_branch
        %119 = sbr.rel (%p117) target = $region20
      $region19: #{tpu_custom_call.1} parent=5 // pred_region
        // Predicated region
        $region21: #{tpu_custom_call.1} parent=19 // pred_check
          %p120 = pneg %p56
        $region22: #{tpu_custom_call.1} parent=19 // pred_check_branch
          %122 = sbr.rel (%p120) target = $region24
        $region23: #{tpu_custom_call.1} parent=19 // pred_region
          %s123 = sand.u32 %s46, 1
          %s124 = scalar_lea.sflag [#allocation6], %s123
          %s125 = sand.u32 %s46, 1
          %s126 = smul.addr %s125, 64
          %s127 = scalar_lea.vmem [#allocation5], %s126
          %s128 = smul.u32 8, %s15
          %s130 = ssub.s32 1024, 1024
          %131 = vsyncadd %s124, %s130
          %s132 = smul.addr %s128, 128
          %s133 = scalar_lea.hbm %s1, %s132
          %s134 = sshll.u32 %s127, 4
          %s135 = int_to_ptr.vmem [resolvable:$true] %s134
          %140 = dma.hbm_to_vmem [thread:$0]  %s133, 1024, %s135, %s124, 128, 128, 8
        $region24: #{tpu_custom_call.1} parent=19 // pred_fallthru
          _
      $region20: #{tpu_custom_call.1} parent=5 // pred_fallthru
        _
      %p141 = scmp.le.s32.totalorder 1, %s15
      %p142 = scmp.lt.s32.totalorder %s15, 3
      %p143 = pnand %p141, %p142
      %p144 = pneg %p143
      // Predicated region
      $region25: #{tpu_custom_call.1} parent=5 // pred_check
        _
      $region26: #{tpu_custom_call.1} parent=5 // pred_check_branch
        %146 = sbr.rel (%p143) target = $region28
      $region27: #{tpu_custom_call.1} parent=5 // pred_region
        %s147 = ssub.s32 %s15, 1
        // Predicated region
        $region29: #{tpu_custom_call.1} parent=27 // pred_check
          %p148 = pneg %p36
        $region30: #{tpu_custom_call.1} parent=27 // pred_check_branch
          %150 = sbr.rel (%p148) target = $region32
        $region31: #{tpu_custom_call.1} parent=27 // pred_region
          %151 = dma.done [#allocation3], 4096
        $region32: #{tpu_custom_call.1} parent=27 // pred_fallthru
          _
        %s152 = sand.u32 %s49, 1
        %s153 = scalar_lea.sflag [#allocation6], %s152
        %s154 = sand.u32 %s49, 1
        %s155 = smul.addr %s154, 64
        %s156 = scalar_lea.vmem [#allocation5], %s155
        // Predicated region
        $region33: #{tpu_custom_call.1} parent=27 // pred_check
          %p157 = pneg %p62
        $region34: #{tpu_custom_call.1} parent=27 // pred_check_branch
          %159 = sbr.rel (%p157) target = $region36
        $region35: #{tpu_custom_call.1} parent=27 // pred_region
          %160 = dma.done %s153, 1024
        $region36: #{tpu_custom_call.1} parent=27 // pred_fallthru
          _
        %p161 = pneg %p36
        %p162 = pneg %p33
        %s163 = sand.u32 %s49, 1
        %s164 = scalar_lea.sflag [#allocation6], %s163
        %s165 = sand.u32 %s49, 1
        %s166 = smul.addr %s165, 64
        %s167 = scalar_lea.vmem [#allocation5], %s166
        %p168 = pneg %p62
        %p169 = pneg %p59
        %p170 = pneg %p88
        %p171 = pneg %p85
        %s172 = sand.u32 %s75, 1
        %s173 = scalar_lea.sflag [#allocation4], %s172
        %s174 = sand.u32 %s75, 1
        %s175 = smul.addr %s174, 8
        %s176 = scalar_lea.vmem [#allocation7], %s175
        %s177 = smul.u32 8, %s20
        %s179 = smul.u32 %s20, 64
        %s180 = sadd.s32 %s179, 128
        %v181 = vlaneseq
        %v182 = vshrl.u32 %v181, 7
        %v183 = vadd.s32 %v182, 8
        %v184 = vadd.s32 %v182, 16
        %v185 = vadd.s32 %v182, 24
        %v186 = vadd.s32 %v182, 32
        %v187 = vadd.s32 %v182, 40
        %v188 = vadd.s32 %v182, 48
        %v189 = vadd.s32 %v182, 56
        %v190 = vstv %s179
        %v191 = vadd.s32 %v182, %v190
        %v192 = vadd.s32 %v183, %v190
        %v193 = vadd.s32 %v184, %v190
        %v194 = vadd.s32 %v185, %v190
        %v195 = vadd.s32 %v186, %v190
        %v196 = vadd.s32 %v187, %v190
        %v197 = vadd.s32 %v188, %v190
        %v198 = vadd.s32 %v189, %v190
        %v199 = vlaneseq
        %v200 = vand.u32 %v199, 127
        %vm201 = vcmp.ne.s32.totalorder %v191, %v200
        %vm202 = vcmp.ne.s32.totalorder %v192, %v200
        %vm203 = vcmp.ne.s32.totalorder %v193, %v200
        %vm204 = vcmp.ne.s32.totalorder %v194, %v200
        %vm205 = vcmp.ne.s32.totalorder %v195, %v200
        %vm206 = vcmp.ne.s32.totalorder %v196, %v200
        %vm207 = vcmp.ne.s32.totalorder %v197, %v200
        %vm208 = vcmp.ne.s32.totalorder %v198, %v200
        %vm209 = vcmp.lt.s32.totalorder %v191, 16
        %vm210 = vcmp.lt.s32.totalorder %v192, 16
        %vm211 = vcmp.lt.s32.totalorder %v193, 16
        %vm212 = vcmp.lt.s32.totalorder %v194, 16
        %vm213 = vcmp.lt.s32.totalorder %v195, 16
        %vm214 = vcmp.lt.s32.totalorder %v196, 16
        %vm215 = vcmp.lt.s32.totalorder %v197, 16
        %vm216 = vcmp.lt.s32.totalorder %v198, 16
        %vm217 = vmand %vm201, %vm209
        %vm218 = vmand %vm202, %vm210
        %vm219 = vmand %vm203, %vm211
        %vm220 = vmand %vm204, %vm212
        %vm221 = vmand %vm205, %vm213
        %vm222 = vmand %vm206, %vm214
        %vm223 = vmand %vm207, %vm215
        %vm224 = vmand %vm208, %vm216
        %vm225 = vcmp.lt.s32.totalorder %v200, 16
        %vm226 = vmand %vm217, %vm225
        %vm227 = vmand %vm218, %vm225
        %vm228 = vmand %vm219, %vm225
        %vm229 = vmand %vm220, %vm225
        %vm230 = vmand %vm221, %vm225
        %vm231 = vmand %vm222, %vm225
        %vm232 = vmand %vm223, %vm225
        %vm233 = vmand %vm224, %vm225
        %v234 = vsel %vm226, 1.0, 0.0
        %v235 = vsel %vm227, 1.0, 0.0
        %v236 = vsel %vm228, 1.0, 0.0
        %v237 = vsel %vm229, 1.0, 0.0
        %v238 = vsel %vm230, 1.0, 0.0
        %v239 = vsel %vm231, 1.0, 0.0
        %v240 = vsel %vm232, 1.0, 0.0
        %v241 = vsel %vm233, 1.0, 0.0
        %v242 = vsel %vm209, 1.0, 0.0
        %v243 = vsel %vm210, 1.0, 0.0
        %v244 = vsel %vm211, 1.0, 0.0
        %v245 = vsel %vm212, 1.0, 0.0
        %v246 = vsel %vm213, 1.0, 0.0
        %v247 = vsel %vm214, 1.0, 0.0
        %v248 = vsel %vm215, 1.0, 0.0
        %v249 = vsel %vm216, 1.0, 0.0
        %v250 = vld [vmem:[#allocation2] sm:$0xff]
        %v251 = vld [vmem:[#allocation2 + $0x8] sm:$0xff]
        %v252 = vld [vmem:[#allocation2 + $0x10] sm:$0xff]
        %v253 = vld [vmem:[#allocation2 + $0x18] sm:$0xff]
        %v254 = vld [vmem:[#allocation2 + $0x20] sm:$0xff]
        %v255 = vld [vmem:[#allocation2 + $0x28] sm:$0xff]
        %v256 = vld [vmem:[#allocation2 + $0x30] sm:$0xff]
        %v257 = vld [vmem:[#allocation2 + $0x38] sm:$0xff]
        %v258 = vld [vmem:[#allocation2 + $0x40] sm:$0xff]
        %v259 = vld [vmem:[#allocation2 + $0x48] sm:$0xff]
        %v260 = vld [vmem:[#allocation2 + $0x50] sm:$0xff]
        %v261 = vld [vmem:[#allocation2 + $0x58] sm:$0xff]
        %v262 = vld [vmem:[#allocation2 + $0x60] sm:$0xff]
        %v263 = vld [vmem:[#allocation2 + $0x68] sm:$0xff]
        %v264 = vld [vmem:[#allocation2 + $0x70] sm:$0xff]
        %v265 = vld [vmem:[#allocation2 + $0x78] sm:$0xff]
        %s266 = scalar_lea.vmem [#allocation2], %s179
        %v267 = vld [vmem:[%s266] sm:$0xff]
        %v268 = vld [vmem:[%s266 + $0x8] sm:$0xff]
        %v269 = vld [vmem:[%s266 + $0x10] sm:$0xff]
        %v270 = vld [vmem:[%s266 + $0x18] sm:$0xff]
        %v271 = vld [vmem:[%s266 + $0x20] sm:$0xff]
        %v272 = vld [vmem:[%s266 + $0x28] sm:$0xff]
        %v273 = vld [vmem:[%s266 + $0x30] sm:$0xff]
        %v274 = vld [vmem:[%s266 + $0x38] sm:$0xff]
        %v275 = vmul.f32 %v250, %v250
        %v276 = vmul.f32 %v251, %v251
        %v277 = vmul.f32 %v252, %v252
        %v278 = vmul.f32 %v253, %v253
        %v279 = vmul.f32 %v254, %v254
        %v280 = vmul.f32 %v255, %v255
        %v281 = vmul.f32 %v256, %v256
        %v282 = vmul.f32 %v257, %v257
        %v283 = vmul.f32 %v258, %v258
        %v284 = vmul.f32 %v259, %v259
        %v285 = vmul.f32 %v260, %v260
        %v286 = vmul.f32 %v261, %v261
        %v287 = vmul.f32 %v262, %v262
        %v288 = vmul.f32 %v263, %v263
        %v289 = vmul.f32 %v264, %v264
        %v290 = vmul.f32 %v265, %v265
        %291 = vadd.xlane.f32.xlu0 %v275
        %v292 = vpop.xlane.xlu0 %291
        %293 = vadd.xlane.f32.xlu0 %v276
        %v294 = vpop.xlane.xlu0 %293
        %295 = vadd.xlane.f32.xlu0 %v277
        %v296 = vpop.xlane.xlu0 %295
        %297 = vadd.xlane.f32.xlu0 %v278
        %v298 = vpop.xlane.xlu0 %297
        %299 = vadd.xlane.f32.xlu0 %v279
        %v300 = vpop.xlane.xlu0 %299
        %301 = vadd.xlane.f32.xlu0 %v280
        %v302 = vpop.xlane.xlu0 %301
        %303 = vadd.xlane.f32.xlu0 %v281
        %v304 = vpop.xlane.xlu0 %303
        %305 = vadd.xlane.f32.xlu0 %v282
        %v306 = vpop.xlane.xlu0 %305
        %307 = vadd.xlane.f32.xlu0 %v283
        %v308 = vpop.xlane.xlu0 %307
        %309 = vadd.xlane.f32.xlu0 %v284
        %v310 = vpop.xlane.xlu0 %309
        %311 = vadd.xlane.f32.xlu0 %v285
        %v312 = vpop.xlane.xlu0 %311
        %313 = vadd.xlane.f32.xlu0 %v286
        %v314 = vpop.xlane.xlu0 %313
        %315 = vadd.xlane.f32.xlu0 %v287
        %v316 = vpop.xlane.xlu0 %315
        %317 = vadd.xlane.f32.xlu0 %v288
        %v318 = vpop.xlane.xlu0 %317
        %319 = vadd.xlane.f32.xlu0 %v289
        %v320 = vpop.xlane.xlu0 %319
        %321 = vadd.xlane.f32.xlu0 %v290
        %v322 = vpop.xlane.xlu0 %321
        %323 = vxpose.xlu0.b32.start [1/16] %v292, 128
        %324 = vxpose.xlu0.b32.cont [2/16] %v294, 128
        %325 = vxpose.xlu0.b32.cont [3/16] %v296, 128
        %326 = vxpose.xlu0.b32.cont [4/16] %v298, 128
        %327 = vxpose.xlu0.b32.cont [5/16] %v300, 128
        %328 = vxpose.xlu0.b32.cont [6/16] %v302, 128
        %329 = vxpose.xlu0.b32.cont [7/16] %v304, 128
        %330 = vxpose.xlu0.b32.cont [8/16] %v306, 128
        %331 = vxpose.xlu0.b32.cont [9/16] %v308, 128
        %332 = vxpose.xlu0.b32.cont [10/16] %v310, 128
        %333 = vxpose.xlu0.b32.cont [11/16] %v312, 128
        %334 = vxpose.xlu0.b32.cont [12/16] %v314, 128
        %335 = vxpose.xlu0.b32.cont [13/16] %v316, 128
        %336 = vxpose.xlu0.b32.cont [14/16] %v318, 128
        %337 = vxpose.xlu0.b32.cont [15/16] %v320, 128
        %338 = vxpose.xlu0.b32.end [16/16] %v322, 128
        %v339 = vpop.trf.xlu0
        %v340 = vpop.trf.xlu0
        %v341 = vpop.trf.xlu0
        %v342 = vpop.trf.xlu0
        %v343 = vpop.trf.xlu0
        %v344 = vpop.trf.xlu0
        %v345 = vpop.trf.xlu0
        %v346 = vpop.trf.xlu0
        %v347 = vpop.trf.xlu0
        %v348 = vpop.trf.xlu0
        %v349 = vpop.trf.xlu0
        %v350 = vpop.trf.xlu0
        %v351 = vpop.trf.xlu0
        %v352 = vpop.trf.xlu0
        %v353 = vpop.trf.xlu0
        %v354 = vpop.trf.xlu0
        %355 = vmatprep.subr.mxu0 0.0
        %356 = vmatpush1.xpose.msra.mxu0 %v265
        %357 = vmatprep.subr.mxu0 0.0
        %358 = vmatpush1.xpose.msra.mxu0 %v264
        %359 = vmatprep.subr.mxu0 0.0
        %360 = vmatpush1.xpose.msra.mxu0 %v263
        %361 = vmatprep.subr.mxu0 0.0
        %362 = vmatpush1.xpose.msra.mxu0 %v262
        %363 = vmatprep.subr.mxu0 0.0
        %364 = vmatpush1.xpose.msra.mxu0 %v261
        %365 = vmatprep.subr.mxu0 0.0
        %366 = vmatpush1.xpose.msra.mxu0 %v260
        %367 = vmatprep.subr.mxu0 0.0
        %368 = vmatpush1.xpose.msra.mxu0 %v259
        %369 = vmatprep.subr.mxu0 0.0
        %370 = vmatpush1.xpose.msra.mxu0 %v258
        %371 = vmatprep.subr.mxu0 0.0
        %372 = vmatpush1.xpose.msra.mxu0 %v257
        %373 = vmatprep.subr.mxu0 0.0
        %374 = vmatpush1.xpose.msra.mxu0 %v256
        %375 = vmatprep.subr.mxu0 0.0
        %376 = vmatpush1.xpose.msra.mxu0 %v255
        %377 = vmatprep.subr.mxu0 0.0
        %378 = vmatpush1.xpose.msra.mxu0 %v254
        %379 = vmatprep.subr.mxu0 0.0
        %380 = vmatpush1.xpose.msra.mxu0 %v253
        %381 = vmatprep.subr.mxu0 0.0
        %382 = vmatpush1.xpose.msra.mxu0 %v252
        %383 = vmatprep.subr.mxu0 0.0
        %384 = vmatpush1.xpose.msra.mxu0 %v251
        %385 = vmatprep.subr.mxu0 0.0
        %386 = vmatpush1.xpose.msra.mxu0 %v250
        %387 = vmatprep.subr.mxu0 0.0
        %388 = vmatpush2.xpose.msra.mxu0 0.0
        %389 = vmatprep.subr.mxu0 0.0
        %390 = vmatpush2.xpose.msra.mxu0 0.0
        %391 = vmatprep.subr.mxu0 0.0
        %392 = vmatpush2.xpose.msra.mxu0 0.0
        %393 = vmatprep.subr.mxu0 0.0
        %394 = vmatpush2.xpose.msra.mxu0 0.0
        %395 = vmatprep.subr.mxu0 0.0
        %396 = vmatpush2.xpose.msra.mxu0 0.0
        %397 = vmatprep.subr.mxu0 0.0
        %398 = vmatpush2.xpose.msra.mxu0 0.0
        %399 = vmatprep.subr.mxu0 0.0
        %400 = vmatpush2.xpose.msra.mxu0 0.0
        %401 = vmatprep.subr.mxu0 0.0
        %402 = vmatpush2.xpose.msra.mxu0 0.0
        %403 = vmatprep.subr.mxu0 0.0
        %404 = vmatpush2.xpose.msra.mxu0 0.0
        %405 = vmatprep.subr.mxu0 0.0
        %406 = vmatpush2.xpose.msra.mxu0 0.0
        %407 = vmatprep.subr.mxu0 0.0
        %408 = vmatpush2.xpose.msra.mxu0 0.0
        %409 = vmatprep.subr.mxu0 0.0
        %410 = vmatpush2.xpose.msra.mxu0 0.0
        %411 = vmatprep.subr.mxu0 0.0
        %412 = vmatpush2.xpose.msra.mxu0 0.0
        %413 = vmatprep.subr.mxu0 0.0
        %414 = vmatpush2.xpose.msra.mxu0 0.0
        %415 = vmatprep.subr.mxu0 0.0
        %416 = vmatpush2.xpose.msra.mxu0 0.0
        %417 = vmatprep.subr.mxu0 0.0
        %418 = vmatpush2.xpose.msra.mxu0 0.0
        %419 = vmatprep.mubr.f32.mxu0 0.0
        %420 = vmatmul.mubr.f32.gmra.mxu0 %v250
        %v421 = vpop.f32.mrf.mxu0
        %v422 = vadd.f32 0.0, %v421
        %v423 = vpop.f32.mrf.mxu0
        %424 = vmatprep.mubr.f32.mxu0 0.0
        %425 = vmatmul.mubr.f32.gmra.mxu0 %v251
        %v426 = vpop.f32.mrf.mxu0
        %v427 = vadd.f32 0.0, %v426
        %v428 = vpop.f32.mrf.mxu0
        %429 = vmatprep.mubr.f32.mxu0 0.0
        %430 = vmatmul.mubr.f32.gmra.mxu0 %v252
        %v431 = vpop.f32.mrf.mxu0
        %v432 = vadd.f32 0.0, %v431
        %v433 = vpop.f32.mrf.mxu0
        %434 = vmatprep.mubr.f32.mxu0 0.0
        %435 = vmatmul.mubr.f32.gmra.mxu0 %v253
        %v436 = vpop.f32.mrf.mxu0
        %v437 = vadd.f32 0.0, %v436
        %v438 = vpop.f32.mrf.mxu0
        %439 = vmatprep.mubr.f32.mxu0 0.0
        %440 = vmatmul.mubr.f32.gmra.mxu0 %v254
        %v441 = vpop.f32.mrf.mxu0
        %v442 = vadd.f32 0.0, %v441
        %v443 = vpop.f32.mrf.mxu0
        %444 = vmatprep.mubr.f32.mxu0 0.0
        %445 = vmatmul.mubr.f32.gmra.mxu0 %v255
        %v446 = vpop.f32.mrf.mxu0
        %v447 = vadd.f32 0.0, %v446
        %v448 = vpop.f32.mrf.mxu0
        %449 = vmatprep.mubr.f32.mxu0 0.0
        %450 = vmatmul.mubr.f32.gmra.mxu0 %v256
        %v451 = vpop.f32.mrf.mxu0
        %v452 = vadd.f32 0.0, %v451
        %v453 = vpop.f32.mrf.mxu0
        %454 = vmatprep.mubr.f32.mxu0 0.0
        %455 = vmatmul.mubr.f32.gmra.mxu0 %v257
        %v456 = vpop.f32.mrf.mxu0
        %v457 = vadd.f32 0.0, %v456
        %v458 = vpop.f32.mrf.mxu0
        %459 = vmatprep.mubr.f32.mxu0 0.0
        %460 = vmatmul.mubr.f32.gmra.mxu0 %v258
        %v461 = vpop.f32.mrf.mxu0
        %v462 = vadd.f32 0.0, %v461
        %v463 = vpop.f32.mrf.mxu0
        %464 = vmatprep.mubr.f32.mxu0 0.0
        %465 = vmatmul.mubr.f32.gmra.mxu0 %v259
        %v466 = vpop.f32.mrf.mxu0
        %v467 = vadd.f32 0.0, %v466
        %v468 = vpop.f32.mrf.mxu0
        %469 = vmatprep.mubr.f32.mxu0 0.0
        %470 = vmatmul.mubr.f32.gmra.mxu0 %v260
        %v471 = vpop.f32.mrf.mxu0
        %v472 = vadd.f32 0.0, %v471
        %v473 = vpop.f32.mrf.mxu0
        %474 = vmatprep.mubr.f32.mxu0 0.0
        %475 = vmatmul.mubr.f32.gmra.mxu0 %v261
        %v476 = vpop.f32.mrf.mxu0
        %v477 = vadd.f32 0.0, %v476
        %v478 = vpop.f32.mrf.mxu0
        %479 = vmatprep.mubr.f32.mxu0 0.0
        %480 = vmatmul.mubr.f32.gmra.mxu0 %v262
        %v481 = vpop.f32.mrf.mxu0
        %v482 = vadd.f32 0.0, %v481
        %v483 = vpop.f32.mrf.mxu0
        %484 = vmatprep.mubr.f32.mxu0 0.0
        %485 = vmatmul.mubr.f32.gmra.mxu0 %v263
        %v486 = vpop.f32.mrf.mxu0
        %v487 = vadd.f32 0.0, %v486
        %v488 = vpop.f32.mrf.mxu0
        %489 = vmatprep.mubr.f32.mxu0 0.0
        %490 = vmatmul.mubr.f32.gmra.mxu0 %v264
        %v491 = vpop.f32.mrf.mxu0
        %v492 = vadd.f32 0.0, %v491
        %v493 = vpop.f32.mrf.mxu0
        %494 = vmatprep.mubr.f32.mxu0 0.0
        %495 = vmatmul.mubr.f32.gmra.mxu0 %v265
        %v496 = vpop.f32.mrf.mxu0
        %v497 = vadd.f32 0.0, %v496
        %v498 = vpop.f32.mrf.mxu0
        %499 = vdwg.mxu0
        %v500 = vlaneseq
        %v501 = vshrl.u32 %v500, 7
        %v502 = vsub.s32 0, %v501
        %v503 = vrot.slane %v339, %v502
        %v504 = vadd.f32 %v292, %v503
        %v505 = vadd.f32 %v294, %v503
        %v506 = vadd.f32 %v296, %v503
        %v507 = vadd.f32 %v298, %v503
        %v508 = vadd.f32 %v300, %v503
        %v509 = vadd.f32 %v302, %v503
        %v510 = vadd.f32 %v304, %v503
        %v511 = vadd.f32 %v306, %v503
        %v512 = vadd.f32 %v308, %v503
        %v513 = vadd.f32 %v310, %v503
        %v514 = vadd.f32 %v312, %v503
        %v515 = vadd.f32 %v314, %v503
        %v516 = vadd.f32 %v316, %v503
        %v517 = vadd.f32 %v318, %v503
        %v518 = vadd.f32 %v320, %v503
        %v519 = vadd.f32 %v322, %v503
        %v520 = vmul.f32 %v422, 2.0
        %v521 = vmul.f32 %v427, 2.0
        %v522 = vmul.f32 %v432, 2.0
        %v523 = vmul.f32 %v437, 2.0
        %v524 = vmul.f32 %v442, 2.0
        %v525 = vmul.f32 %v447, 2.0
        %v526 = vmul.f32 %v452, 2.0
        %v527 = vmul.f32 %v457, 2.0
        %v528 = vmul.f32 %v462, 2.0
        %v529 = vmul.f32 %v467, 2.0
        %v530 = vmul.f32 %v472, 2.0
        %v531 = vmul.f32 %v477, 2.0
        %v532 = vmul.f32 %v482, 2.0
        %v533 = vmul.f32 %v487, 2.0
        %v534 = vmul.f32 %v492, 2.0
        %v535 = vmul.f32 %v497, 2.0
        %v536 = vsub.f32 %v504, %v520
        %v537 = vsub.f32 %v505, %v521
        %v538 = vsub.f32 %v506, %v522
        %v539 = vsub.f32 %v507, %v523
        %v540 = vsub.f32 %v508, %v524
        %v541 = vsub.f32 %v509, %v525
        %v542 = vsub.f32 %v510, %v526
        %v543 = vsub.f32 %v511, %v527
        %v544 = vsub.f32 %v512, %v528
        %v545 = vsub.f32 %v513, %v529
        %v546 = vsub.f32 %v514, %v530
        %v547 = vsub.f32 %v515, %v531
        %v548 = vsub.f32 %v516, %v532
        %v549 = vsub.f32 %v517, %v533
        %v550 = vsub.f32 %v518, %v534
        %v551 = vsub.f32 %v519, %v535
        %v552 = vmax.f32 %v536, 0.0
        %v553 = vmax.f32 %v537, 0.0
        %v554 = vmax.f32 %v538, 0.0
        %v555 = vmax.f32 %v539, 0.0
        %v556 = vmax.f32 %v540, 0.0
        %v557 = vmax.f32 %v541, 0.0
        %v558 = vmax.f32 %v542, 0.0
        %v559 = vmax.f32 %v543, 0.0
        %v560 = vmax.f32 %v544, 0.0
        %v561 = vmax.f32 %v545, 0.0
        %v562 = vmax.f32 %v546, 0.0
        %v563 = vmax.f32 %v547, 0.0
        %v564 = vmax.f32 %v548, 0.0
        %v565 = vmax.f32 %v549, 0.0
        %v566 = vmax.f32 %v550, 0.0
        %v567 = vmax.f32 %v551, 0.0
        %v568 = vmul.f32 %v552, -0.07
        %v569 = vmul.f32 %v553, -0.07
        %v570 = vmul.f32 %v554, -0.07
        %v571 = vmul.f32 %v555, -0.07
        %v572 = vmul.f32 %v556, -0.07
        %v573 = vmul.f32 %v557, -0.07
        %v574 = vmul.f32 %v558, -0.07
        %v575 = vmul.f32 %v559, -0.07
        %v576 = vmul.f32 %v560, -0.07
        %v577 = vmul.f32 %v561, -0.07
        %v578 = vmul.f32 %v562, -0.07
        %v579 = vmul.f32 %v563, -0.07
        %v580 = vmul.f32 %v564, -0.07
        %v581 = vmul.f32 %v565, -0.07
        %v582 = vmul.f32 %v566, -0.07
        %v583 = vmul.f32 %v567, -0.07
        %v584 = vmul.f32 %v568, 1.442695
        %v585 = vpow.pop %v584
        %v586 = vmul.f32 %v569, 1.442695
        %v587 = vpow.pop %v586
        %v588 = vmul.f32 %v570, 1.442695
        %v589 = vpow.pop %v588
        %v590 = vmul.f32 %v571, 1.442695
        %v591 = vpow.pop %v590
        %v592 = vmul.f32 %v572, 1.442695
        %v593 = vpow.pop %v592
        %v594 = vmul.f32 %v573, 1.442695
        %v595 = vpow.pop %v594
        %v596 = vmul.f32 %v574, 1.442695
        %v597 = vpow.pop %v596
        %v598 = vmul.f32 %v575, 1.442695
        %v599 = vpow.pop %v598
        %v600 = vmul.f32 %v576, 1.442695
        %v601 = vpow.pop %v600
        %v602 = vmul.f32 %v577, 1.442695
        %v603 = vpow.pop %v602
        %v604 = vmul.f32 %v578, 1.442695
        %v605 = vpow.pop %v604
        %v606 = vmul.f32 %v579, 1.442695
        %v607 = vpow.pop %v606
        %v608 = vmul.f32 %v580, 1.442695
        %v609 = vpow.pop %v608
        %v610 = vmul.f32 %v581, 1.442695
        %v611 = vpow.pop %v610
        %v612 = vmul.f32 %v582, 1.442695
        %v613 = vpow.pop %v612
        %v614 = vmul.f32 %v583, 1.442695
        %v615 = vpow.pop %v614
        %v616 = vpack.c.bf16 %v587, %v585
        %v617 = vpack.c.bf16 %v591, %v589
        %v618 = vpack.c.bf16 %v595, %v593
        %v619 = vpack.c.bf16 %v599, %v597
        %v620 = vpack.c.bf16 %v603, %v601
        %v621 = vpack.c.bf16 %v607, %v605
        %v622 = vpack.c.bf16 %v611, %v609
        %v623 = vpack.c.bf16 %v615, %v613
        %v624 = vmul.f32 %v267, %v267
        %v625 = vmul.f32 %v268, %v268
        %v626 = vmul.f32 %v269, %v269
        %v627 = vmul.f32 %v270, %v270
        %v628 = vmul.f32 %v271, %v271
        %v629 = vmul.f32 %v272, %v272
        %v630 = vmul.f32 %v273, %v273
        %v631 = vmul.f32 %v274, %v274
        %632 = vadd.xlane.f32.xlu0 %v624
        %v633 = vpop.xlane.xlu0 %632
        %634 = vadd.xlane.f32.xlu0 %v625
        %v635 = vpop.xlane.xlu0 %634
        %636 = vadd.xlane.f32.xlu0 %v626
        %v637 = vpop.xlane.xlu0 %636
        %638 = vadd.xlane.f32.xlu0 %v627
        %v639 = vpop.xlane.xlu0 %638
        %640 = vadd.xlane.f32.xlu0 %v628
        %v641 = vpop.xlane.xlu0 %640
        %642 = vadd.xlane.f32.xlu0 %v629
        %v643 = vpop.xlane.xlu0 %642
        %644 = vadd.xlane.f32.xlu0 %v630
        %v645 = vpop.xlane.xlu0 %644
        %646 = vadd.xlane.f32.xlu0 %v631
        %v647 = vpop.xlane.xlu0 %646
        %648 = vmatprep.subr.mxu0 0.0
        %649 = vmatpush1.xpose.msra.mxu0 %v265
        %650 = vmatprep.subr.mxu0 0.0
        %651 = vmatpush1.xpose.msra.mxu0 %v264
        %652 = vmatprep.subr.mxu0 0.0
        %653 = vmatpush1.xpose.msra.mxu0 %v263
        %654 = vmatprep.subr.mxu0 0.0
        %655 = vmatpush1.xpose.msra.mxu0 %v262
        %656 = vmatprep.subr.mxu0 0.0
        %657 = vmatpush1.xpose.msra.mxu0 %v261
        %658 = vmatprep.subr.mxu0 0.0
        %659 = vmatpush1.xpose.msra.mxu0 %v260
        %660 = vmatprep.subr.mxu0 0.0
        %661 = vmatpush1.xpose.msra.mxu0 %v259
        %662 = vmatprep.subr.mxu0 0.0
        %663 = vmatpush1.xpose.msra.mxu0 %v258
        %664 = vmatprep.subr.mxu0 0.0
        %665 = vmatpush1.xpose.msra.mxu0 %v257
        %666 = vmatprep.subr.mxu0 0.0
        %667 = vmatpush1.xpose.msra.mxu0 %v256
        %668 = vmatprep.subr.mxu0 0.0
        %669 = vmatpush1.xpose.msra.mxu0 %v255
        %670 = vmatprep.subr.mxu0 0.0
        %671 = vmatpush1.xpose.msra.mxu0 %v254
        %672 = vmatprep.subr.mxu0 0.0
        %673 = vmatpush1.xpose.msra.mxu0 %v253
        %674 = vmatprep.subr.mxu0 0.0
        %675 = vmatpush1.xpose.msra.mxu0 %v252
        %676 = vmatprep.subr.mxu0 0.0
        %677 = vmatpush1.xpose.msra.mxu0 %v251
        %678 = vmatprep.subr.mxu0 0.0
        %679 = vmatpush1.xpose.msra.mxu0 %v250
        %680 = vmatprep.subr.mxu0 0.0
        %681 = vmatpush2.xpose.msra.mxu0 0.0
        %682 = vmatprep.subr.mxu0 0.0
        %683 = vmatpush2.xpose.msra.mxu0 0.0
        %684 = vmatprep.subr.mxu0 0.0
        %685 = vmatpush2.xpose.msra.mxu0 0.0
        %686 = vmatprep.subr.mxu0 0.0
        %687 = vmatpush2.xpose.msra.mxu0 0.0
        %688 = vmatprep.subr.mxu0 0.0
        %689 = vmatpush2.xpose.msra.mxu0 0.0
        %690 = vmatprep.subr.mxu0 0.0
        %691 = vmatpush2.xpose.msra.mxu0 0.0
        %692 = vmatprep.subr.mxu0 0.0
        %693 = vmatpush2.xpose.msra.mxu0 0.0
        %694 = vmatprep.subr.mxu0 0.0
        %695 = vmatpush2.xpose.msra.mxu0 0.0
        %696 = vmatprep.subr.mxu0 0.0
        %697 = vmatpush2.xpose.msra.mxu0 0.0
        %698 = vmatprep.subr.mxu0 0.0
        %699 = vmatpush2.xpose.msra.mxu0 0.0
        %700 = vmatprep.subr.mxu0 0.0
        %701 = vmatpush2.xpose.msra.mxu0 0.0
        %702 = vmatprep.subr.mxu0 0.0
        %703 = vmatpush2.xpose.msra.mxu0 0.0
        %704 = vmatprep.subr.mxu0 0.0
        %705 = vmatpush2.xpose.msra.mxu0 0.0
        %706 = vmatprep.subr.mxu0 0.0
        %707 = vmatpush2.xpose.msra.mxu0 0.0
        %708 = vmatprep.subr.mxu0 0.0
        %709 = vmatpush2.xpose.msra.mxu0 0.0
        %710 = vmatprep.subr.mxu0 0.0
        %711 = vmatpush2.xpose.msra.mxu0 0.0
        %712 = vmatprep.mubr.f32.mxu0 0.0
        %713 = vmatmul.mubr.f32.gmra.mxu0 %v267
        %v714 = vpop.f32.mrf.mxu0
        %v715 = vadd.f32 0.0, %v714
        %v716 = vpop.f32.mrf.mxu0
        %717 = vmatprep.mubr.f32.mxu0 0.0
        %718 = vmatmul.mubr.f32.gmra.mxu0 %v268
        %v719 = vpop.f32.mrf.mxu0
        %v720 = vadd.f32 0.0, %v719
        %v721 = vpop.f32.mrf.mxu0
        %722 = vmatprep.mubr.f32.mxu0 0.0
        %723 = vmatmul.mubr.f32.gmra.mxu0 %v269
        %v724 = vpop.f32.mrf.mxu0
        %v725 = vadd.f32 0.0, %v724
        %v726 = vpop.f32.mrf.mxu0
        %727 = vmatprep.mubr.f32.mxu0 0.0
        %728 = vmatmul.mubr.f32.gmra.mxu0 %v270
        %v729 = vpop.f32.mrf.mxu0
        %v730 = vadd.f32 0.0, %v729
        %v731 = vpop.f32.mrf.mxu0
        %732 = vmatprep.mubr.f32.mxu0 0.0
        %733 = vmatmul.mubr.f32.gmra.mxu0 %v271
        %v734 = vpop.f32.mrf.mxu0
        %v735 = vadd.f32 0.0, %v734
        %v736 = vpop.f32.mrf.mxu0
        %737 = vmatprep.mubr.f32.mxu0 0.0
        %738 = vmatmul.mubr.f32.gmra.mxu0 %v272
        %v739 = vpop.f32.mrf.mxu0
        %v740 = vadd.f32 0.0, %v739
        %v741 = vpop.f32.mrf.mxu0
        %742 = vmatprep.mubr.f32.mxu0 0.0
        %743 = vmatmul.mubr.f32.gmra.mxu0 %v273
        %v744 = vpop.f32.mrf.mxu0
        %v745 = vadd.f32 0.0, %v744
        %v746 = vpop.f32.mrf.mxu0
        %747 = vmatprep.mubr.f32.mxu0 0.0
        %748 = vmatmul.mubr.f32.gmra.mxu0 %v274
        %v749 = vpop.f32.mrf.mxu0
        %v750 = vadd.f32 0.0, %v749
        %v751 = vpop.f32.mrf.mxu0
        %752 = vdwg.mxu0
        %v753 = vadd.f32 %v633, %v503
        %v754 = vadd.f32 %v635, %v503
        %v755 = vadd.f32 %v637, %v503
        %v756 = vadd.f32 %v639, %v503
        %v757 = vadd.f32 %v641, %v503
        %v758 = vadd.f32 %v643, %v503
        %v759 = vadd.f32 %v645, %v503
        %v760 = vadd.f32 %v647, %v503
        %v761 = vmul.f32 %v715, 2.0
        %v762 = vmul.f32 %v720, 2.0
        %v763 = vmul.f32 %v725, 2.0
        %v764 = vmul.f32 %v730, 2.0
        %v765 = vmul.f32 %v735, 2.0
        %v766 = vmul.f32 %v740, 2.0
        %v767 = vmul.f32 %v745, 2.0
        %v768 = vmul.f32 %v750, 2.0
        %v769 = vsub.f32 %v753, %v761
        %v770 = vsub.f32 %v754, %v762
        %v771 = vsub.f32 %v755, %v763
        %v772 = vsub.f32 %v756, %v764
        %v773 = vsub.f32 %v757, %v765
        %v774 = vsub.f32 %v758, %v766
        %v775 = vsub.f32 %v759, %v767
        %v776 = vsub.f32 %v760, %v768
        %v777 = vmax.f32 %v769, 0.0
        %v778 = vmax.f32 %v770, 0.0
        %v779 = vmax.f32 %v771, 0.0
        %v780 = vmax.f32 %v772, 0.0
        %v781 = vmax.f32 %v773, 0.0
        %v782 = vmax.f32 %v774, 0.0
        %v783 = vmax.f32 %v775, 0.0
        %v784 = vmax.f32 %v776, 0.0
        %v785 = vmul.f32 %v777, -0.07
        %v786 = vmul.f32 %v778, -0.07
        %v787 = vmul.f32 %v779, -0.07
        %v788 = vmul.f32 %v780, -0.07
        %v789 = vmul.f32 %v781, -0.07
        %v790 = vmul.f32 %v782, -0.07
        %v791 = vmul.f32 %v783, -0.07
        %v792 = vmul.f32 %v784, -0.07
        %v793 = vmul.f32 %v785, 1.442695
        %v794 = vpow.pop %v793
        %v795 = vmul.f32 %v786, 1.442695
        %v796 = vpow.pop %v795
        %v797 = vmul.f32 %v787, 1.442695
        %v798 = vpow.pop %v797
        %v799 = vmul.f32 %v788, 1.442695
        %v800 = vpow.pop %v799
        %v801 = vmul.f32 %v789, 1.442695
        %v802 = vpow.pop %v801
        %v803 = vmul.f32 %v790, 1.442695
        %v804 = vpow.pop %v803
        %v805 = vmul.f32 %v791, 1.442695
        %v806 = vpow.pop %v805
        %v807 = vmul.f32 %v792, 1.442695
        %v808 = vpow.pop %v807
        %v809 = vsub.f32 1.0, %v794
        %v810 = vsub.f32 1.0, %v796
        %v811 = vsub.f32 1.0, %v798
        %v812 = vsub.f32 1.0, %v800
        %v813 = vsub.f32 1.0, %v802
        %v814 = vsub.f32 1.0, %v804
        %v815 = vsub.f32 1.0, %v806
        %v816 = vsub.f32 1.0, %v808
        %v817 = vld [vmem:[%s156] sm:$0xff]
        %v818 = vld [vmem:[%s156 + $0x8] sm:$0xff]
        %v819 = vld [vmem:[%s156 + $0x10] sm:$0xff]
        %v820 = vld [vmem:[%s156 + $0x18] sm:$0xff]
        %v821 = vld [vmem:[%s156 + $0x20] sm:$0xff]
        %v822 = vld [vmem:[%s156 + $0x28] sm:$0xff]
        %v823 = vld [vmem:[%s156 + $0x30] sm:$0xff]
        %v824 = vld [vmem:[%s156 + $0x38] sm:$0xff]
        %v825 = vmul.f32 %v817, %v234
        %v826 = vmul.f32 %v818, %v235
        %v827 = vmul.f32 %v819, %v236
        %v828 = vmul.f32 %v820, %v237
        %v829 = vmul.f32 %v821, %v238
        %v830 = vmul.f32 %v822, %v239
        %v831 = vmul.f32 %v823, %v240
        %v832 = vmul.f32 %v824, %v241
        loop: start=0, step=1, limit=200
        $region37: #{tpu_custom_call.1} parent=27 // loop_pre_header
          _
        $region38: #{tpu_custom_call.1} parent=27 // loop_header
          %s834 = sphi 0, %s838
          %p835 = scmp.ge.s32.totalorder %s834, 200
          %v839 = vphi %v825, %v1115
          %v840 = vphi %v826, %v1116
          %v841 = vphi %v827, %v1117
          %v842 = vphi %v828, %v1118
          %v843 = vphi %v829, %v1119
          %v844 = vphi %v830, %v1120
          %v845 = vphi %v831, %v1121
          %v846 = vphi %v832, %v1122
          %v847 = vphi %v825, %v839
          %v848 = vphi %v826, %v840
          %v849 = vphi %v827, %v841
          %v850 = vphi %v828, %v842
          %v851 = vphi %v829, %v843
          %v852 = vphi %v830, %v844
          %v853 = vphi %v831, %v845
          %v854 = vphi %v832, %v846
        $region39: #{tpu_custom_call.1} parent=27 // loop_header_branch
          %837 = sbr.rel (%p835) target = $region43
        $region40: #{tpu_custom_call.1} parent=27 // loop_body
          %s855 = scvt.s32.f32 %s834
          %s856 = sadd.f32 %s855, 3.0
          %v857 = vstv %s856
          %v858 = vrcp.pop %v857
          %s859 = vtos %v858
          %s860 = smul.f32 %s855, %s859
          %v861 = vsub.f32 %v839, %v847
          %v862 = vsub.f32 %v840, %v848
          %v863 = vsub.f32 %v841, %v849
          %v864 = vsub.f32 %v842, %v850
          %v865 = vsub.f32 %v843, %v851
          %v866 = vsub.f32 %v844, %v852
          %v867 = vsub.f32 %v845, %v853
          %v868 = vsub.f32 %v846, %v854
          %v869 = vstv %s860
          %v870 = vmul.f32 %v869, %v861
          %v871 = vmul.f32 %v869, %v862
          %v872 = vmul.f32 %v869, %v863
          %v873 = vmul.f32 %v869, %v864
          %v874 = vmul.f32 %v869, %v865
          %v875 = vmul.f32 %v869, %v866
          %v876 = vmul.f32 %v869, %v867
          %v877 = vmul.f32 %v869, %v868
          %v878 = vadd.f32 %v839, %v870
          %v879 = vadd.f32 %v840, %v871
          %v880 = vadd.f32 %v841, %v872
          %v881 = vadd.f32 %v842, %v873
          %v882 = vadd.f32 %v843, %v874
          %v883 = vadd.f32 %v844, %v875
          %v884 = vadd.f32 %v845, %v876
          %v885 = vadd.f32 %v846, %v877
          %886 = vadd.xlane.f32.xlu0 %v878
          %v887 = vpop.xlane.xlu0 %886
          %888 = vadd.xlane.f32.xlu0 %v879
          %v889 = vpop.xlane.xlu0 %888
          %890 = vadd.xlane.f32.xlu0 %v880
          %v891 = vpop.xlane.xlu0 %890
          %892 = vadd.xlane.f32.xlu0 %v881
          %v893 = vpop.xlane.xlu0 %892
          %894 = vadd.xlane.f32.xlu0 %v882
          %v895 = vpop.xlane.xlu0 %894
          %896 = vadd.xlane.f32.xlu0 %v883
          %v897 = vpop.xlane.xlu0 %896
          %898 = vadd.xlane.f32.xlu0 %v884
          %v899 = vpop.xlane.xlu0 %898
          %900 = vadd.xlane.f32.xlu0 %v885
          %v901 = vpop.xlane.xlu0 %900
          %v902 = vmul.f32 %v794, %v878
          %v903 = vmul.f32 %v796, %v879
          %v904 = vmul.f32 %v798, %v880
          %v905 = vmul.f32 %v800, %v881
          %v906 = vmul.f32 %v802, %v882
          %v907 = vmul.f32 %v804, %v883
          %v908 = vmul.f32 %v806, %v884
          %v909 = vmul.f32 %v808, %v885
          %910 = vadd.xlane.f32.xlu0 %v902
          %v911 = vpop.xlane.xlu0 %910
          %912 = vadd.xlane.f32.xlu0 %v903
          %v913 = vpop.xlane.xlu0 %912
          %914 = vadd.xlane.f32.xlu0 %v904
          %v915 = vpop.xlane.xlu0 %914
          %916 = vadd.xlane.f32.xlu0 %v905
          %v917 = vpop.xlane.xlu0 %916
          %918 = vadd.xlane.f32.xlu0 %v906
          %v919 = vpop.xlane.xlu0 %918
          %920 = vadd.xlane.f32.xlu0 %v907
          %v921 = vpop.xlane.xlu0 %920
          %922 = vadd.xlane.f32.xlu0 %v908
          %v923 = vpop.xlane.xlu0 %922
          %924 = vadd.xlane.f32.xlu0 %v909
          %v925 = vpop.xlane.xlu0 %924
          %v926 = vadd.f32 %v911, 2.0
          %v927 = vadd.f32 %v913, 2.0
          %v928 = vadd.f32 %v915, 2.0
          %v929 = vadd.f32 %v917, 2.0
          %v930 = vadd.f32 %v919, 2.0
          %v931 = vadd.f32 %v921, 2.0
          %v932 = vadd.f32 %v923, 2.0
          %v933 = vadd.f32 %v925, 2.0
          %v934 = vpack.c.bf16 %v879, %v878
          %v935 = vpack.c.bf16 %v881, %v880
          %v936 = vpack.c.bf16 %v883, %v882
          %v937 = vpack.c.bf16 %v885, %v884
          %v938 = vmul.f32 %v878, 0.1
          %v939 = vmul.f32 %v879, 0.1
          %v940 = vmul.f32 %v880, 0.1
          %v941 = vmul.f32 %v881, 0.1
          %v942 = vmul.f32 %v882, 0.1
          %v943 = vmul.f32 %v883, 0.1
          %v944 = vmul.f32 %v884, 0.1
          %v945 = vmul.f32 %v885, 0.1
          %946 = vmatprep.subr.bf16.mxu0 0
          %947 = vmatpush1.bf16.msra.mxu0 %v623
          %948 = vmatprep.subr.bf16.mxu0 0
          %949 = vmatpush1.bf16.msra.mxu0 %v622
          %950 = vmatprep.subr.bf16.mxu0 0
          %951 = vmatpush1.bf16.msra.mxu0 %v621
          %952 = vmatprep.subr.bf16.mxu0 0
          %953 = vmatpush1.bf16.msra.mxu0 %v620
          %954 = vmatprep.subr.bf16.mxu0 0
          %955 = vmatpush1.bf16.msra.mxu0 %v619
          %956 = vmatprep.subr.bf16.mxu0 0
          %957 = vmatpush1.bf16.msra.mxu0 %v618
          %958 = vmatprep.subr.bf16.mxu0 0
          %959 = vmatpush1.bf16.msra.mxu0 %v617
          %960 = vmatprep.subr.bf16.mxu0 0
          %961 = vmatpush1.bf16.msra.mxu0 %v616
          %962 = vmatprep.subr.bf16.mxu0 0
          %963 = vmatpush2.bf16.msra.mxu0 0
          %964 = vmatprep.subr.bf16.mxu0 0
          %965 = vmatpush2.bf16.msra.mxu0 0
          %966 = vmatprep.subr.bf16.mxu0 0
          %967 = vmatpush2.bf16.msra.mxu0 0
          %968 = vmatprep.subr.bf16.mxu0 0
          %969 = vmatpush2.bf16.msra.mxu0 0
          %970 = vmatprep.subr.bf16.mxu0 0
          %971 = vmatpush2.bf16.msra.mxu0 0
          %972 = vmatprep.subr.bf16.mxu0 0
          %973 = vmatpush2.bf16.msra.mxu0 0
          %974 = vmatprep.subr.bf16.mxu0 0
          %975 = vmatpush2.bf16.msra.mxu0 0
          %976 = vmatprep.subr.bf16.mxu0 0
          %977 = vmatpush2.bf16.msra.mxu0 0
          %978 = vmatprep.mubr.bf16.mxu0 0
          %979 = vmatmul.mubr.bf16.gmra.mxu0 %v934
          %v980 = vpop.f32.mrf.mxu0
          %v981 = vadd.f32 %v938, %v980
          %v982 = vpop.f32.mrf.mxu0
          %v983 = vpop.f32.mrf.mxu0
          %v984 = vadd.f32 %v939, %v983
          %v985 = vpop.f32.mrf.mxu0
          %986 = vmatprep.mubr.bf16.mxu0 0
          %987 = vmatmul.mubr.bf16.gmra.mxu0 %v935
          %v988 = vpop.f32.mrf.mxu0
          %v989 = vadd.f32 %v940, %v988
          %v990 = vpop.f32.mrf.mxu0
          %v991 = vpop.f32.mrf.mxu0
          %v992 = vadd.f32 %v941, %v991
          %v993 = vpop.f32.mrf.mxu0
          %994 = vmatprep.mubr.bf16.mxu0 0
          %995 = vmatmul.mubr.bf16.gmra.mxu0 %v936
          %v996 = vpop.f32.mrf.mxu0
          %v997 = vadd.f32 %v942, %v996
          %v998 = vpop.f32.mrf.mxu0
          %v999 = vpop.f32.mrf.mxu0
          %v1000 = vadd.f32 %v943, %v999
          %v1001 = vpop.f32.mrf.mxu0
          %1002 = vmatprep.mubr.bf16.mxu0 0
          %1003 = vmatmul.mubr.bf16.gmra.mxu0 %v937
          %v1004 = vpop.f32.mrf.mxu0
          %v1005 = vadd.f32 %v944, %v1004
          %v1006 = vpop.f32.mrf.mxu0
          %v1007 = vpop.f32.mrf.mxu0
          %v1008 = vadd.f32 %v945, %v1007
          %v1009 = vpop.f32.mrf.mxu0
          %1010 = vdwg.mxu0
          %v1011 = vmul.f32 %v887, %v809
          %v1012 = vmul.f32 %v889, %v810
          %v1013 = vmul.f32 %v891, %v811
          %v1014 = vmul.f32 %v893, %v812
          %v1015 = vmul.f32 %v895, %v813
          %v1016 = vmul.f32 %v897, %v814
          %v1017 = vmul.f32 %v899, %v815
          %v1018 = vmul.f32 %v901, %v816
          %v1019 = vadd.f32 %v981, %v1011
          %v1020 = vadd.f32 %v984, %v1012
          %v1021 = vadd.f32 %v989, %v1013
          %v1022 = vadd.f32 %v992, %v1014
          %v1023 = vadd.f32 %v997, %v1015
          %v1024 = vadd.f32 %v1000, %v1016
          %v1025 = vadd.f32 %v1005, %v1017
          %v1026 = vadd.f32 %v1008, %v1018
          %v1027 = vsub.f32 %v1019, %v926
          %v1028 = vsub.f32 %v1020, %v927
          %v1029 = vsub.f32 %v1021, %v928
          %v1030 = vsub.f32 %v1022, %v929
          %v1031 = vsub.f32 %v1023, %v930
          %v1032 = vsub.f32 %v1024, %v931
          %v1033 = vsub.f32 %v1025, %v932
          %v1034 = vsub.f32 %v1026, %v933
          %v1035 = vmul.f32 %v1027, %v234
          %v1036 = vmul.f32 %v1028, %v235
          %v1037 = vmul.f32 %v1029, %v236
          %v1038 = vmul.f32 %v1030, %v237
          %v1039 = vmul.f32 %v1031, %v238
          %v1040 = vmul.f32 %v1032, %v239
          %v1041 = vmul.f32 %v1033, %v240
          %v1042 = vmul.f32 %v1034, %v241
          %v1043 = vmul.f32 %v1035, %v1035
          %v1044 = vmul.f32 %v1036, %v1036
          %v1045 = vmul.f32 %v1037, %v1037
          %v1046 = vmul.f32 %v1038, %v1038
          %v1047 = vmul.f32 %v1039, %v1039
          %v1048 = vmul.f32 %v1040, %v1040
          %v1049 = vmul.f32 %v1041, %v1041
          %v1050 = vmul.f32 %v1042, %v1042
          %1051 = vadd.xlane.f32.xlu0 %v1043
          %v1052 = vpop.xlane.xlu0 %1051
          %1053 = vadd.xlane.f32.xlu0 %v1044
          %v1054 = vpop.xlane.xlu0 %1053
          %1055 = vadd.xlane.f32.xlu0 %v1045
          %v1056 = vpop.xlane.xlu0 %1055
          %1057 = vadd.xlane.f32.xlu0 %v1046
          %v1058 = vpop.xlane.xlu0 %1057
          %1059 = vadd.xlane.f32.xlu0 %v1047
          %v1060 = vpop.xlane.xlu0 %1059
          %1061 = vadd.xlane.f32.xlu0 %v1048
          %v1062 = vpop.xlane.xlu0 %1061
          %1063 = vadd.xlane.f32.xlu0 %v1049
          %v1064 = vpop.xlane.xlu0 %1063
          %1065 = vadd.xlane.f32.xlu0 %v1050
          %v1066 = vpop.xlane.xlu0 %1065
          %v1067 = vmax.f32 %v1052, 1e-24
          %v1068 = vmax.f32 %v1054, 1e-24
          %v1069 = vmax.f32 %v1056, 1e-24
          %v1070 = vmax.f32 %v1058, 1e-24
          %v1071 = vmax.f32 %v1060, 1e-24
          %v1072 = vmax.f32 %v1062, 1e-24
          %v1073 = vmax.f32 %v1064, 1e-24
          %v1074 = vmax.f32 %v1066, 1e-24
          %v1075 = vrsqrt.pop %v1067
          %v1076 = vrsqrt.pop %v1068
          %v1077 = vrsqrt.pop %v1069
          %v1078 = vrsqrt.pop %v1070
          %v1079 = vrsqrt.pop %v1071
          %v1080 = vrsqrt.pop %v1072
          %v1081 = vrsqrt.pop %v1073
          %v1082 = vrsqrt.pop %v1074
          %v1083 = vmul.f32 %v1035, %v1075
          %v1084 = vmul.f32 %v1036, %v1076
          %v1085 = vmul.f32 %v1037, %v1077
          %v1086 = vmul.f32 %v1038, %v1078
          %v1087 = vmul.f32 %v1039, %v1079
          %v1088 = vmul.f32 %v1040, %v1080
          %v1089 = vmul.f32 %v1041, %v1081
          %v1090 = vmul.f32 %v1042, %v1082
          %v1091 = vmul.f32 %v1083, 0.001
          %v1092 = vmul.f32 %v1084, 0.001
          %v1093 = vmul.f32 %v1085, 0.001
          %v1094 = vmul.f32 %v1086, 0.001
          %v1095 = vmul.f32 %v1087, 0.001
          %v1096 = vmul.f32 %v1088, 0.001
          %v1097 = vmul.f32 %v1089, 0.001
          %v1098 = vmul.f32 %v1090, 0.001
          %v1099 = vsub.f32 %v878, %v1091
          %v1100 = vsub.f32 %v879, %v1092
          %v1101 = vsub.f32 %v880, %v1093
          %v1102 = vsub.f32 %v881, %v1094
          %v1103 = vsub.f32 %v882, %v1095
          %v1104 = vsub.f32 %v883, %v1096
          %v1105 = vsub.f32 %v884, %v1097
          %v1106 = vsub.f32 %v885, %v1098
          %v1107 = vmax.f32 %v1099, 0.0
          %v1108 = vmax.f32 %v1100, 0.0
          %v1109 = vmax.f32 %v1101, 0.0
          %v1110 = vmax.f32 %v1102, 0.0
          %v1111 = vmax.f32 %v1103, 0.0
          %v1112 = vmax.f32 %v1104, 0.0
          %v1113 = vmax.f32 %v1105, 0.0
          %v1114 = vmax.f32 %v1106, 0.0
          %v1115 = vmin.f32 %v1107, 1.0
          %v1116 = vmin.f32 %v1108, 1.0
          %v1117 = vmin.f32 %v1109, 1.0
          %v1118 = vmin.f32 %v1110, 1.0
          %v1119 = vmin.f32 %v1111, 1.0
          %v1120 = vmin.f32 %v1112, 1.0
          %v1121 = vmin.f32 %v1113, 1.0
          %v1122 = vmin.f32 %v1114, 1.0
        $region41: #{tpu_custom_call.1} parent=27 // loop_footer
          %s838 = sadd.s32 1, %s834
        $region42: #{tpu_custom_call.1} parent=27 // loop_footer_branch
          %833 = sbr.rel target = $region38
        $region43: #{tpu_custom_call.1} parent=27 // loop_exit
          _
        %s1123 = scalar_lea.vmem [#allocation2], %s180
        %v1124 = vld [vmem:[%s1123] sm:$0xff]
        %v1125 = vld [vmem:[%s1123 + $0x8] sm:$0xff]
        %v1126 = vld [vmem:[%s1123 + $0x10] sm:$0xff]
        %v1127 = vld [vmem:[%s1123 + $0x18] sm:$0xff]
        %v1128 = vld [vmem:[%s1123 + $0x20] sm:$0xff]
        %v1129 = vld [vmem:[%s1123 + $0x28] sm:$0xff]
        %v1130 = vld [vmem:[%s1123 + $0x30] sm:$0xff]
        %v1131 = vld [vmem:[%s1123 + $0x38] sm:$0xff]
        %v1132 = vmul.f32 %v1124, %v1124
        %v1133 = vmul.f32 %v1125, %v1125
        %v1134 = vmul.f32 %v1126, %v1126
        %v1135 = vmul.f32 %v1127, %v1127
        %v1136 = vmul.f32 %v1128, %v1128
        %v1137 = vmul.f32 %v1129, %v1129
        %v1138 = vmul.f32 %v1130, %v1130
        %v1139 = vmul.f32 %v1131, %v1131
        %1140 = vadd.xlane.f32.xlu0 %v1132
        %v1141 = vpop.xlane.xlu0 %1140
        %1142 = vadd.xlane.f32.xlu0 %v1133
        %v1143 = vpop.xlane.xlu0 %1142
        %1144 = vadd.xlane.f32.xlu0 %v1134
        %v1145 = vpop.xlane.xlu0 %1144
        %1146 = vadd.xlane.f32.xlu0 %v1135
        %v1147 = vpop.xlane.xlu0 %1146
        %1148 = vadd.xlane.f32.xlu0 %v1136
        %v1149 = vpop.xlane.xlu0 %1148
        %1150 = vadd.xlane.f32.xlu0 %v1137
        %v1151 = vpop.xlane.xlu0 %1150
        %1152 = vadd.xlane.f32.xlu0 %v1138
        %v1153 = vpop.xlane.xlu0 %1152
        %1154 = vadd.xlane.f32.xlu0 %v1139
        %v1155 = vpop.xlane.xlu0 %1154
        %1156 = vmatprep.subr.mxu0 0.0
        %1157 = vmatpush1.xpose.msra.mxu0 %v265
        %1158 = vmatprep.subr.mxu0 0.0
        %1159 = vmatpush1.xpose.msra.mxu0 %v264
        %1160 = vmatprep.subr.mxu0 0.0
        %1161 = vmatpush1.xpose.msra.mxu0 %v263
        %1162 = vmatprep.subr.mxu0 0.0
        %1163 = vmatpush1.xpose.msra.mxu0 %v262
        %1164 = vmatprep.subr.mxu0 0.0
        %1165 = vmatpush1.xpose.msra.mxu0 %v261
        %1166 = vmatprep.subr.mxu0 0.0
        %1167 = vmatpush1.xpose.msra.mxu0 %v260
        %1168 = vmatprep.subr.mxu0 0.0
        %1169 = vmatpush1.xpose.msra.mxu0 %v259
        %1170 = vmatprep.subr.mxu0 0.0
        %1171 = vmatpush1.xpose.msra.mxu0 %v258
        %1172 = vmatprep.subr.mxu0 0.0
        %1173 = vmatpush1.xpose.msra.mxu0 %v257
        %1174 = vmatprep.subr.mxu0 0.0
        %1175 = vmatpush1.xpose.msra.mxu0 %v256
        %1176 = vmatprep.subr.mxu0 0.0
        %1177 = vmatpush1.xpose.msra.mxu0 %v255
        %1178 = vmatprep.subr.mxu0 0.0
        %1179 = vmatpush1.xpose.msra.mxu0 %v254
        %1180 = vmatprep.subr.mxu0 0.0
        %1181 = vmatpush1.xpose.msra.mxu0 %v253
        %1182 = vmatprep.subr.mxu0 0.0
        %1183 = vmatpush1.xpose.msra.mxu0 %v252
        %1184 = vmatprep.subr.mxu0 0.0
        %1185 = vmatpush1.xpose.msra.mxu0 %v251
        %1186 = vmatprep.subr.mxu0 0.0
        %1187 = vmatpush1.xpose.msra.mxu0 %v250
        %1188 = vmatprep.subr.mxu0 0.0
        %1189 = vmatpush2.xpose.msra.mxu0 0.0
        %1190 = vmatprep.subr.mxu0 0.0
        %1191 = vmatpush2.xpose.msra.mxu0 0.0
        %1192 = vmatprep.subr.mxu0 0.0
        %1193 = vmatpush2.xpose.msra.mxu0 0.0
        %1194 = vmatprep.subr.mxu0 0.0
        %1195 = vmatpush2.xpose.msra.mxu0 0.0
        %1196 = vmatprep.subr.mxu0 0.0
        %1197 = vmatpush2.xpose.msra.mxu0 0.0
        %1198 = vmatprep.subr.mxu0 0.0
        %1199 = vmatpush2.xpose.msra.mxu0 0.0
        %1200 = vmatprep.subr.mxu0 0.0
        %1201 = vmatpush2.xpose.msra.mxu0 0.0
        %1202 = vmatprep.subr.mxu0 0.0
        %1203 = vmatpush2.xpose.msra.mxu0 0.0
        %1204 = vmatprep.subr.mxu0 0.0
        %1205 = vmatpush2.xpose.msra.mxu0 0.0
        %1206 = vmatprep.subr.mxu0 0.0
        %1207 = vmatpush2.xpose.msra.mxu0 0.0
        %1208 = vmatprep.subr.mxu0 0.0
        %1209 = vmatpush2.xpose.msra.mxu0 0.0
        %1210 = vmatprep.subr.mxu0 0.0
        %1211 = vmatpush2.xpose.msra.mxu0 0.0
        %1212 = vmatprep.subr.mxu0 0.0
        %1213 = vmatpush2.xpose.msra.mxu0 0.0
        %1214 = vmatprep.subr.mxu0 0.0
        %1215 = vmatpush2.xpose.msra.mxu0 0.0
        %1216 = vmatprep.subr.mxu0 0.0
        %1217 = vmatpush2.xpose.msra.mxu0 0.0
        %1218 = vmatprep.subr.mxu0 0.0
        %1219 = vmatpush2.xpose.msra.mxu0 0.0
        %1220 = vmatprep.mubr.f32.mxu0 0.0
        %1221 = vmatmul.mubr.f32.gmra.mxu0 %v1124
        %v1222 = vpop.f32.mrf.mxu0
        %v1223 = vadd.f32 0.0, %v1222
        %v1224 = vpop.f32.mrf.mxu0
        %1225 = vmatprep.mubr.f32.mxu0 0.0
        %1226 = vmatmul.mubr.f32.gmra.mxu0 %v1125
        %v1227 = vpop.f32.mrf.mxu0
        %v1228 = vadd.f32 0.0, %v1227
        %v1229 = vpop.f32.mrf.mxu0
        %1230 = vmatprep.mubr.f32.mxu0 0.0
        %1231 = vmatmul.mubr.f32.gmra.mxu0 %v1126
        %v1232 = vpop.f32.mrf.mxu0
        %v1233 = vadd.f32 0.0, %v1232
        %v1234 = vpop.f32.mrf.mxu0
        %1235 = vmatprep.mubr.f32.mxu0 0.0
        %1236 = vmatmul.mubr.f32.gmra.mxu0 %v1127
        %v1237 = vpop.f32.mrf.mxu0
        %v1238 = vadd.f32 0.0, %v1237
        %v1239 = vpop.f32.mrf.mxu0
        %1240 = vmatprep.mubr.f32.mxu0 0.0
        %1241 = vmatmul.mubr.f32.gmra.mxu0 %v1128
        %v1242 = vpop.f32.mrf.mxu0
        %v1243 = vadd.f32 0.0, %v1242
        %v1244 = vpop.f32.mrf.mxu0
        %1245 = vmatprep.mubr.f32.mxu0 0.0
        %1246 = vmatmul.mubr.f32.gmra.mxu0 %v1129
        %v1247 = vpop.f32.mrf.mxu0
        %v1248 = vadd.f32 0.0, %v1247
        %v1249 = vpop.f32.mrf.mxu0
        %1250 = vmatprep.mubr.f32.mxu0 0.0
        %1251 = vmatmul.mubr.f32.gmra.mxu0 %v1130
        %v1252 = vpop.f32.mrf.mxu0
        %v1253 = vadd.f32 0.0, %v1252
        %v1254 = vpop.f32.mrf.mxu0
        %1255 = vmatprep.mubr.f32.mxu0 0.0
        %1256 = vmatmul.mubr.f32.gmra.mxu0 %v1131
        %v1257 = vpop.f32.mrf.mxu0
        %v1258 = vadd.f32 0.0, %v1257
        %v1259 = vpop.f32.mrf.mxu0
        %1260 = vdwg.mxu0
        %v1261 = vadd.f32 %v1141, %v503
        %v1262 = vadd.f32 %v1143, %v503
        %v1263 = vadd.f32 %v1145, %v503
        %v1264 = vadd.f32 %v1147, %v503
        %v1265 = vadd.f32 %v1149, %v503
        %v1266 = vadd.f32 %v1151, %v503
        %v1267 = vadd.f32 %v1153, %v503
        %v1268 = vadd.f32 %v1155, %v503
        %v1269 = vmul.f32 %v1223, 2.0
        %v1270 = vmul.f32 %v1228, 2.0
        %v1271 = vmul.f32 %v1233, 2.0
        %v1272 = vmul.f32 %v1238, 2.0
        %v1273 = vmul.f32 %v1243, 2.0
        %v1274 = vmul.f32 %v1248, 2.0
        %v1275 = vmul.f32 %v1253, 2.0
        %v1276 = vmul.f32 %v1258, 2.0
        %v1277 = vsub.f32 %v1261, %v1269
        %v1278 = vsub.f32 %v1262, %v1270
        %v1279 = vsub.f32 %v1263, %v1271
        %v1280 = vsub.f32 %v1264, %v1272
        %v1281 = vsub.f32 %v1265, %v1273
        %v1282 = vsub.f32 %v1266, %v1274
        %v1283 = vsub.f32 %v1267, %v1275
        %v1284 = vsub.f32 %v1268, %v1276
        %v1285 = vmax.f32 %v1277, 0.0
        %v1286 = vmax.f32 %v1278, 0.0
        %v1287 = vmax.f32 %v1279, 0.0
        %v1288 = vmax.f32 %v1280, 0.0
        %v1289 = vmax.f32 %v1281, 0.0
        %v1290 = vmax.f32 %v1282, 0.0
        %v1291 = vmax.f32 %v1283, 0.0
        %v1292 = vmax.f32 %v1284, 0.0
        %v1293 = vmul.f32 %v1285, -0.07
        %v1294 = vmul.f32 %v1286, -0.07
        %v1295 = vmul.f32 %v1287, -0.07
        %v1296 = vmul.f32 %v1288, -0.07
        %v1297 = vmul.f32 %v1289, -0.07
        %v1298 = vmul.f32 %v1290, -0.07
        %v1299 = vmul.f32 %v1291, -0.07
        %v1300 = vmul.f32 %v1292, -0.07
        %v1301 = vmul.f32 %v1293, 1.442695
        %v1302 = vpow.pop %v1301
        %v1303 = vmul.f32 %v1294, 1.442695
        %v1304 = vpow.pop %v1303
        %v1305 = vmul.f32 %v1295, 1.442695
        %v1306 = vpow.pop %v1305
        %v1307 = vmul.f32 %v1296, 1.442695
        %v1308 = vpow.pop %v1307
        %v1309 = vmul.f32 %v1297, 1.442695
        %v1310 = vpow.pop %v1309
        %v1311 = vmul.f32 %v1298, 1.442695
        %v1312 = vpow.pop %v1311
        %v1313 = vmul.f32 %v1299, 1.442695
        %v1314 = vpow.pop %v1313
        %v1315 = vmul.f32 %v1300, 1.442695
        %v1316 = vpow.pop %v1315
        %v1317 = vsub.f32 %v267, %v1124
        %v1318 = vsub.f32 %v268, %v1125
        %v1319 = vsub.f32 %v269, %v1126
        %v1320 = vsub.f32 %v270, %v1127
        %v1321 = vsub.f32 %v271, %v1128
        %v1322 = vsub.f32 %v272, %v1129
        %v1323 = vsub.f32 %v273, %v1130
        %v1324 = vsub.f32 %v274, %v1131
        %v1325 = vmul.f32 %v1317, %v1317
        %v1326 = vmul.f32 %v1318, %v1318
        %v1327 = vmul.f32 %v1319, %v1319
        %v1328 = vmul.f32 %v1320, %v1320
        %v1329 = vmul.f32 %v1321, %v1321
        %v1330 = vmul.f32 %v1322, %v1322
        %v1331 = vmul.f32 %v1323, %v1323
        %v1332 = vmul.f32 %v1324, %v1324
        %1333 = vadd.xlane.f32.xlu0 %v1325
        %v1334 = vpop.xlane.xlu0 %1333
        %1335 = vadd.xlane.f32.xlu0 %v1326
        %v1336 = vpop.xlane.xlu0 %1335
        %1337 = vadd.xlane.f32.xlu0 %v1327
        %v1338 = vpop.xlane.xlu0 %1337
        %1339 = vadd.xlane.f32.xlu0 %v1328
        %v1340 = vpop.xlane.xlu0 %1339
        %1341 = vadd.xlane.f32.xlu0 %v1329
        %v1342 = vpop.xlane.xlu0 %1341
        %1343 = vadd.xlane.f32.xlu0 %v1330
        %v1344 = vpop.xlane.xlu0 %1343
        %1345 = vadd.xlane.f32.xlu0 %v1331
        %v1346 = vpop.xlane.xlu0 %1345
        %1347 = vadd.xlane.f32.xlu0 %v1332
        %v1348 = vpop.xlane.xlu0 %1347
        %v1349 = vmul.f32 %v1334, -0.07
        %v1350 = vmul.f32 %v1336, -0.07
        %v1351 = vmul.f32 %v1338, -0.07
        %v1352 = vmul.f32 %v1340, -0.07
        %v1353 = vmul.f32 %v1342, -0.07
        %v1354 = vmul.f32 %v1344, -0.07
        %v1355 = vmul.f32 %v1346, -0.07
        %v1356 = vmul.f32 %v1348, -0.07
        %v1357 = vmul.f32 %v1349, 1.442695
        %v1358 = vpow.pop %v1357
        %v1359 = vmul.f32 %v1350, 1.442695
        %v1360 = vpow.pop %v1359
        %v1361 = vmul.f32 %v1351, 1.442695
        %v1362 = vpow.pop %v1361
        %v1363 = vmul.f32 %v1352, 1.442695
        %v1364 = vpow.pop %v1363
        %v1365 = vmul.f32 %v1353, 1.442695
        %v1366 = vpow.pop %v1365
        %v1367 = vmul.f32 %v1354, 1.442695
        %v1368 = vpow.pop %v1367
        %v1369 = vmul.f32 %v1355, 1.442695
        %v1370 = vpow.pop %v1369
        %v1371 = vmul.f32 %v1356, 1.442695
        %v1372 = vpow.pop %v1371
        %1373 = vadd.xlane.f32.xlu0 %v839
        %v1374 = vpop.xlane.xlu0 %1373
        %1375 = vadd.xlane.f32.xlu0 %v840
        %v1376 = vpop.xlane.xlu0 %1375
        %1377 = vadd.xlane.f32.xlu0 %v841
        %v1378 = vpop.xlane.xlu0 %1377
        %1379 = vadd.xlane.f32.xlu0 %v842
        %v1380 = vpop.xlane.xlu0 %1379
        %1381 = vadd.xlane.f32.xlu0 %v843
        %v1382 = vpop.xlane.xlu0 %1381
        %1383 = vadd.xlane.f32.xlu0 %v844
        %v1384 = vpop.xlane.xlu0 %1383
        %1385 = vadd.xlane.f32.xlu0 %v845
        %v1386 = vpop.xlane.xlu0 %1385
        %1387 = vadd.xlane.f32.xlu0 %v846
        %v1388 = vpop.xlane.xlu0 %1387
        %v1389 = vmul.f32 %v1374, %v1358
        %v1390 = vmul.f32 %v1376, %v1360
        %v1391 = vmul.f32 %v1378, %v1362
        %v1392 = vmul.f32 %v1380, %v1364
        %v1393 = vmul.f32 %v1382, %v1366
        %v1394 = vmul.f32 %v1384, %v1368
        %v1395 = vmul.f32 %v1386, %v1370
        %v1396 = vmul.f32 %v1388, %v1372
        %v1397 = vmul.f32 %v1389, %v242
        %v1398 = vmul.f32 %v1390, %v243
        %v1399 = vmul.f32 %v1391, %v244
        %v1400 = vmul.f32 %v1392, %v245
        %v1401 = vmul.f32 %v1393, %v246
        %v1402 = vmul.f32 %v1394, %v247
        %v1403 = vmul.f32 %v1395, %v248
        %v1404 = vmul.f32 %v1396, %v249
        %vm1405 = vcmask 7168
        %v1406 = vsel %vm1405, %v1397, 0.0
        %v1407 = vsel %vm1405, %v1398, 0.0
        %v1408 = vadd.f32 %v1406, %v1407
        %v1409 = vsel %vm1405, %v1399, 0.0
        %v1410 = vadd.f32 %v1408, %v1409
        %v1411 = vsel %vm1405, %v1400, 0.0
        %v1412 = vadd.f32 %v1410, %v1411
        %v1413 = vsel %vm1405, %v1401, 0.0
        %v1414 = vadd.f32 %v1412, %v1413
        %v1415 = vsel %vm1405, %v1402, 0.0
        %v1416 = vadd.f32 %v1414, %v1415
        %v1417 = vsel %vm1405, %v1403, 0.0
        %v1418 = vadd.f32 %v1416, %v1417
        %v1419 = vsel %vm1405, %v1404, 0.0
        %v1420 = vadd.f32 %v1418, %v1419
        %1421 = vadd.xlane.f32.xlu0 %v1420
        %v1422 = vpop.xlane.xlu0 %1421
        %v1423 = vrot.slane %v1422, 4
        %v1424 = vadd.f32 %v1422, %v1423
        %v1425 = vrot.slane %v1424, 2
        %v1426 = vadd.f32 %v1424, %v1425
        %v1427 = vrot.slane %v1426, 1
        %v1428 = vadd.f32 %v1426, %v1427
        %s1429 = vtos %v1428
        %v1430 = vmul.f32 %v1358, %v242
        %v1431 = vmul.f32 %v1360, %v243
        %v1432 = vmul.f32 %v1362, %v244
        %v1433 = vmul.f32 %v1364, %v245
        %v1434 = vmul.f32 %v1366, %v246
        %v1435 = vmul.f32 %v1368, %v247
        %v1436 = vmul.f32 %v1370, %v248
        %v1437 = vmul.f32 %v1372, %v249
        %v1438 = vsel %vm1405, %v1430, 0.0
        %v1439 = vsel %vm1405, %v1431, 0.0
        %v1440 = vadd.f32 %v1438, %v1439
        %v1441 = vsel %vm1405, %v1432, 0.0
        %v1442 = vadd.f32 %v1440, %v1441
        %v1443 = vsel %vm1405, %v1433, 0.0
        %v1444 = vadd.f32 %v1442, %v1443
        %v1445 = vsel %vm1405, %v1434, 0.0
        %v1446 = vadd.f32 %v1444, %v1445
        %v1447 = vsel %vm1405, %v1435, 0.0
        %v1448 = vadd.f32 %v1446, %v1447
        %v1449 = vsel %vm1405, %v1436, 0.0
        %v1450 = vadd.f32 %v1448, %v1449
        %v1451 = vsel %vm1405, %v1437, 0.0
        %v1452 = vadd.f32 %v1450, %v1451
        %1453 = vadd.xlane.f32.xlu0 %v1452
        %v1454 = vpop.xlane.xlu0 %1453
        %v1455 = vrot.slane %v1454, 4
        %v1456 = vadd.f32 %v1454, %v1455
        %v1457 = vrot.slane %v1456, 2
        %v1458 = vadd.f32 %v1456, %v1457
        %v1459 = vrot.slane %v1458, 1
        %v1460 = vadd.f32 %v1458, %v1459
        %s1461 = vtos %v1460
        %v1462 = vmul.f32 %v839, %v1302
        %v1463 = vmul.f32 %v840, %v1304
        %v1464 = vmul.f32 %v841, %v1306
        %v1465 = vmul.f32 %v842, %v1308
        %v1466 = vmul.f32 %v843, %v1310
        %v1467 = vmul.f32 %v844, %v1312
        %v1468 = vmul.f32 %v845, %v1314
        %v1469 = vmul.f32 %v846, %v1316
        %v1470 = vadd.f32 %v1462, %v1463
        %v1471 = vadd.f32 %v1470, %v1464
        %v1472 = vadd.f32 %v1471, %v1465
        %v1473 = vadd.f32 %v1472, %v1466
        %v1474 = vadd.f32 %v1473, %v1467
        %v1475 = vadd.f32 %v1474, %v1468
        %v1476 = vadd.f32 %v1475, %v1469
        %1477 = vadd.xlane.f32.xlu0 %v1476
        %v1478 = vpop.xlane.xlu0 %1477
        %v1479 = vrot.slane %v1478, 4
        %v1480 = vadd.f32 %v1478, %v1479
        %v1481 = vrot.slane %v1480, 2
        %v1482 = vadd.f32 %v1480, %v1481
        %v1483 = vrot.slane %v1482, 1
        %v1484 = vadd.f32 %v1482, %v1483
        %s1485 = vtos %v1484
        %v1486 = vmul.f32 %v1302, %v234
        %v1487 = vmul.f32 %v1304, %v235
        %v1488 = vmul.f32 %v1306, %v236
        %v1489 = vmul.f32 %v1308, %v237
        %v1490 = vmul.f32 %v1310, %v238
        %v1491 = vmul.f32 %v1312, %v239
        %v1492 = vmul.f32 %v1314, %v240
        %v1493 = vmul.f32 %v1316, %v241
        %v1494 = vadd.f32 %v1486, %v1487
        %v1495 = vadd.f32 %v1494, %v1488
        %v1496 = vadd.f32 %v1495, %v1489
        %v1497 = vadd.f32 %v1496, %v1490
        %v1498 = vadd.f32 %v1497, %v1491
        %v1499 = vadd.f32 %v1498, %v1492
        %v1500 = vadd.f32 %v1499, %v1493
        %1501 = vadd.xlane.f32.xlu0 %v1500
        %v1502 = vpop.xlane.xlu0 %1501
        %v1503 = vrot.slane %v1502, 4
        %v1504 = vadd.f32 %v1502, %v1503
        %v1505 = vrot.slane %v1504, 2
        %v1506 = vadd.f32 %v1504, %v1505
        %v1507 = vrot.slane %v1506, 1
        %v1508 = vadd.f32 %v1506, %v1507
        %s1509 = vtos %v1508
        %vm1510 = vcmp.eq.f32.partialorder %v839, 1.0
        %vm1511 = vcmp.eq.f32.partialorder %v840, 1.0
        %vm1512 = vcmp.eq.f32.partialorder %v841, 1.0
        %vm1513 = vcmp.eq.f32.partialorder %v842, 1.0
        %vm1514 = vcmp.eq.f32.partialorder %v843, 1.0
        %vm1515 = vcmp.eq.f32.partialorder %v844, 1.0
        %vm1516 = vcmp.eq.f32.partialorder %v845, 1.0
        %vm1517 = vcmp.eq.f32.partialorder %v846, 1.0
        %v1518 = vsel %vm1510, 1.0, 0.0
        %v1519 = vsel %vm1511, 1.0, 0.0
        %v1520 = vsel %vm1512, 1.0, 0.0
        %v1521 = vsel %vm1513, 1.0, 0.0
        %v1522 = vsel %vm1514, 1.0, 0.0
        %v1523 = vsel %vm1515, 1.0, 0.0
        %v1524 = vsel %vm1516, 1.0, 0.0
        %v1525 = vsel %vm1517, 1.0, 0.0
        %v1526 = vmul.f32 %v1518, %v234
        %v1527 = vmul.f32 %v1519, %v235
        %v1528 = vmul.f32 %v1520, %v236
        %v1529 = vmul.f32 %v1521, %v237
        %v1530 = vmul.f32 %v1522, %v238
        %v1531 = vmul.f32 %v1523, %v239
        %v1532 = vmul.f32 %v1524, %v240
        %v1533 = vmul.f32 %v1525, %v241
        %v1534 = vadd.f32 %v1526, %v1527
        %v1535 = vadd.f32 %v1534, %v1528
        %v1536 = vadd.f32 %v1535, %v1529
        %v1537 = vadd.f32 %v1536, %v1530
        %v1538 = vadd.f32 %v1537, %v1531
        %v1539 = vadd.f32 %v1538, %v1532
        %v1540 = vadd.f32 %v1539, %v1533
        %1541 = vadd.xlane.f32.xlu0 %v1540
        %v1542 = vpop.xlane.xlu0 %1541
        %v1543 = vrot.slane %v1542, 4
        %v1544 = vadd.f32 %v1542, %v1543
        %v1545 = vrot.slane %v1544, 2
        %v1546 = vadd.f32 %v1544, %v1545
        %v1547 = vrot.slane %v1546, 1
        %v1548 = vadd.f32 %v1546, %v1547
        %s1549 = vtos %v1548
        %vm1550 = vcmp.gt.f32.partialorder %v839, 0.0
        %vm1551 = vcmp.gt.f32.partialorder %v840, 0.0
        %vm1552 = vcmp.gt.f32.partialorder %v841, 0.0
        %vm1553 = vcmp.gt.f32.partialorder %v842, 0.0
        %vm1554 = vcmp.gt.f32.partialorder %v843, 0.0
        %vm1555 = vcmp.gt.f32.partialorder %v844, 0.0
        %vm1556 = vcmp.gt.f32.partialorder %v845, 0.0
        %vm1557 = vcmp.gt.f32.partialorder %v846, 0.0
        %v1558 = vsel %vm1550, 1.0, 0.0
        %v1559 = vsel %vm1551, 1.0, 0.0
        %v1560 = vsel %vm1552, 1.0, 0.0
        %v1561 = vsel %vm1553, 1.0, 0.0
        %v1562 = vsel %vm1554, 1.0, 0.0
        %v1563 = vsel %vm1555, 1.0, 0.0
        %v1564 = vsel %vm1556, 1.0, 0.0
        %v1565 = vsel %vm1557, 1.0, 0.0
        %v1566 = vmul.f32 %v1558, %v234
        %v1567 = vmul.f32 %v1559, %v235
        %v1568 = vmul.f32 %v1560, %v236
        %v1569 = vmul.f32 %v1561, %v237
        %v1570 = vmul.f32 %v1562, %v238
        %v1571 = vmul.f32 %v1563, %v239
        %v1572 = vmul.f32 %v1564, %v240
        %v1573 = vmul.f32 %v1565, %v241
        %v1574 = vadd.f32 %v1566, %v1567
        %v1575 = vadd.f32 %v1574, %v1568
        %v1576 = vadd.f32 %v1575, %v1569
        %v1577 = vadd.f32 %v1576, %v1570
        %v1578 = vadd.f32 %v1577, %v1571
        %v1579 = vadd.f32 %v1578, %v1572
        %v1580 = vadd.f32 %v1579, %v1573
        %1581 = vadd.xlane.f32.xlu0 %v1580
        %v1582 = vpop.xlane.xlu0 %1581
        %v1583 = vrot.slane %v1582, 4
        %v1584 = vadd.f32 %v1582, %v1583
        %v1585 = vrot.slane %v1584, 2
        %v1586 = vadd.f32 %v1584, %v1585
        %v1587 = vrot.slane %v1586, 1
        %v1588 = vadd.f32 %v1586, %v1587
        %s1589 = vtos %v1588
        %vm1590 = vcmp.eq.f32.partialorder %v839, 0.0
        %vm1591 = vcmp.eq.f32.partialorder %v840, 0.0
        %vm1592 = vcmp.eq.f32.partialorder %v841, 0.0
        %vm1593 = vcmp.eq.f32.partialorder %v842, 0.0
        %vm1594 = vcmp.eq.f32.partialorder %v843, 0.0
        %vm1595 = vcmp.eq.f32.partialorder %v844, 0.0
        %vm1596 = vcmp.eq.f32.partialorder %v845, 0.0
        %vm1597 = vcmp.eq.f32.partialorder %v846, 0.0
        %v1598 = vsel %vm1590, 1.0, 0.0
        %v1599 = vsel %vm1591, 1.0, 0.0
        %v1600 = vsel %vm1592, 1.0, 0.0
        %v1601 = vsel %vm1593, 1.0, 0.0
        %v1602 = vsel %vm1594, 1.0, 0.0
        %v1603 = vsel %vm1595, 1.0, 0.0
        %v1604 = vsel %vm1596, 1.0, 0.0
        %v1605 = vsel %vm1597, 1.0, 0.0
        %v1606 = vmul.f32 %v1598, %v234
        %v1607 = vmul.f32 %v1599, %v235
        %v1608 = vmul.f32 %v1600, %v236
        %v1609 = vmul.f32 %v1601, %v237
        %v1610 = vmul.f32 %v1602, %v238
        %v1611 = vmul.f32 %v1603, %v239
        %v1612 = vmul.f32 %v1604, %v240
        %v1613 = vmul.f32 %v1605, %v241
        %v1614 = vadd.f32 %v1606, %v1607
        %v1615 = vadd.f32 %v1614, %v1608
        %v1616 = vadd.f32 %v1615, %v1609
        %v1617 = vadd.f32 %v1616, %v1610
        %v1618 = vadd.f32 %v1617, %v1611
        %v1619 = vadd.f32 %v1618, %v1612
        %v1620 = vadd.f32 %v1619, %v1613
        %1621 = vadd.xlane.f32.xlu0 %v1620
        %v1622 = vpop.xlane.xlu0 %1621
        %v1623 = vrot.slane %v1622, 4
        %v1624 = vadd.f32 %v1622, %v1623
        %v1625 = vrot.slane %v1624, 2
        %v1626 = vadd.f32 %v1624, %v1625
        %v1627 = vrot.slane %v1626, 1
        %v1628 = vadd.f32 %v1626, %v1627
        %s1629 = vtos %v1628
        %vm1630 = vcmp.eq.s32.totalorder %v182, 0
        %v1631 = vstv %s1429
        %v1632 = vsel %vm1630, %v1631, 0.0
        %vm1633 = vcmp.eq.s32.totalorder %v182, 1
        %v1634 = vstv %s1461
        %v1635 = vsel %vm1633, %v1634, 0.0
        %v1636 = vadd.f32 %v1632, %v1635
        %vm1637 = vcmp.eq.s32.totalorder %v182, 2
        %v1638 = vstv %s1485
        %v1639 = vsel %vm1637, %v1638, 0.0
        %v1640 = vadd.f32 %v1636, %v1639
        %vm1641 = vcmp.eq.s32.totalorder %v182, 3
        %v1642 = vstv %s1509
        %v1643 = vsel %vm1641, %v1642, 0.0
        %v1644 = vadd.f32 %v1640, %v1643
        %vm1645 = vcmp.eq.s32.totalorder %v182, 4
        %v1646 = vstv %s1549
        %v1647 = vsel %vm1645, %v1646, 0.0
        %v1648 = vadd.f32 %v1644, %v1647
        %vm1649 = vcmp.eq.s32.totalorder %v182, 5
        %v1650 = vstv %s1589
        %v1651 = vsel %vm1649, %v1650, 0.0
        %v1652 = vadd.f32 %v1648, %v1651
        %vm1653 = vcmp.eq.s32.totalorder %v182, 6
        %v1654 = vstv %s1629
        %v1655 = vsel %vm1653, %v1654, 0.0
        %v1656 = vadd.f32 %v1652, %v1655
        %1657 = vst [vmem:[%s176] sm:$0xff] %v1656
        %s1658 = sand.u32 %s75, 1
        %s1659 = scalar_lea.sflag [#allocation4], %s1658
        %s1660 = sand.u32 %s75, 1
        %s1661 = smul.addr %s1660, 8
        %s1662 = scalar_lea.vmem [#allocation7], %s1661
        // Predicated region
        $region44: #{tpu_custom_call.1} parent=27 // pred_check
          %p1663 = pneg %p85
        $region45: #{tpu_custom_call.1} parent=27 // pred_check_branch
          %1665 = sbr.rel (%p1663) target = $region47
        $region46: #{tpu_custom_call.1} parent=27 // pred_region
          %s1667 = ssub.s32 128, 128
          %1668 = vsyncadd %s1659, %s1667
          %s1669 = smul.addr %s20, 128
          %s1670 = scalar_lea.hbm %s2, %s1669
          %s1672 = sshll.u32 %s1662, 4
          %s1673 = int_to_ptr.vmem [resolvable:$true] %s1672
          %1675 = dma.vmem_to_hbm [thread:$0]  %s1673, 128, %s1670, %s1659
        $region47: #{tpu_custom_call.1} parent=27 // pred_fallthru
          _
      $region28: #{tpu_custom_call.1} parent=5 // pred_fallthru
        _
      %p1676 = scmp.le.s32.totalorder 2, %s15
      // Predicated region
      $region48: #{tpu_custom_call.1} parent=5 // pred_check
        %p1677 = pneg %p1676
      $region49: #{tpu_custom_call.1} parent=5 // pred_check_branch
        %1679 = sbr.rel (%p1677) target = $region51
      $region50: #{tpu_custom_call.1} parent=5 // pred_region
        %s1680 = ssub.s32 %s15, 2
        // Predicated region
        $region52: #{tpu_custom_call.1} parent=50 // pred_check
          %p1681 = pneg %p91
        $region53: #{tpu_custom_call.1} parent=50 // pred_check_branch
          %1683 = sbr.rel (%p1681) target = $region55
        $region54: #{tpu_custom_call.1} parent=50 // pred_region
          %s1684 = sand.u32 %s76, 1
          %s1685 = scalar_lea.sflag [#allocation4], %s1684
          %s1686 = sand.u32 %s76, 1
          %s1687 = smul.addr %s1686, 8
          %s1688 = scalar_lea.vmem [#allocation7], %s1687
          %1689 = dma.done %s1685, 128
        $region55: #{tpu_custom_call.1} parent=50 // pred_fallthru
          _
      $region51: #{tpu_custom_call.1} parent=5 // pred_fallthru
        _
    $region6: #{tpu_custom_call.1} parent=1 // loop_footer
      %s19 = sadd.s32 1, %s15
    $region7: #{tpu_custom_call.1} parent=1 // loop_footer_branch
      %14 = sbr.rel target = $region3
    $region8: #{tpu_custom_call.1} parent=1 // loop_exit
      _
    %1690 = vsyncpa [#allocation3], 1
    %s1691 = scalar_lea.sflag [#allocation3], 1
    %1692 = vsyncpa %s1691, 1
    %1693 = vsyncpa [#allocation6], 1
    %s1694 = scalar_lea.sflag [#allocation6], 1
    %1695 = vsyncpa %s1694, 1
    %1696 = vsyncpa [#allocation4], 1
    %s1697 = scalar_lea.sflag [#allocation4], 1
    %1698 = vsyncpa %s1697, 1

</llo_original>
